<compile_context>
chip_gen: v7x
topology: tpu7x:2x2x1
jax: 0.10.0
libtpu: 0.0.40
codegen_flags: <defaults>
</compile_context>

<pallas_src>
import jax
import jax.numpy as jnp
from jax.experimental import pallas as pl
from jax.experimental.pallas import tpu as pltpu


def _round_up(n, m):
    return (n + m - 1) // m * m


def _layernorm(x, gamma, beta, eps=1e-5):
    # Single-pass LayerNorm: var = E[x^2] - mu^2 (one reduction pair, not two
    # dependent passes).  Matches torch.nn.LayerNorm (biased variance, eps in sqrt).
    mu = jnp.mean(x, axis=-1, keepdims=True)
    ms = jnp.mean(x * x, axis=-1, keepdims=True)
    var = ms - mu * mu
    return (x - mu) * jax.lax.rsqrt(var + eps) * gamma + beta


def actor_net_kernel(x_ref, wp_ref, bp_ref,
                     wvo_ref, bvo_ref,
                     g1_ref, bt1_ref,
                     w1_ref, b1_ref, w2_ref, b2_ref,
                     g2_ref, bt2_ref,
                     wh_ref, bh_ref, wa_ref,
                     maskb_ref, out_ref):
    f32, bf16 = jnp.float32, jnp.bfloat16

    # input_projection: [TB, S] @ [S, H] + [1, H] -> [TB, H]
    # x arrives in its native f32 and is cast to bf16 here (halves x HBM traffic
    # vs. a separate host-side cast/pad pass).
    x = x_ref[...].astype(bf16)
    h = jnp.dot(x, wp_ref[...], preferred_element_type=f32) + bp_ref[...]

    # --- TransformerEncoderLayer (post-norm, batch_first, seq_len == 1) ---
    # With a single token the attention softmax is exactly 1, so multi-head
    # attention collapses to out_proj(V).  V and out projections are fused on
    # the host into one matrix: wvo = wv @ wo, bvo = bv @ wo + bo.
    attn = jnp.dot(h.astype(bf16), wvo_ref[...], preferred_element_type=f32) + bvo_ref[...]
    # TODO(synk): dropout(p=0.1) omitted -- deterministic (eval-mode) semantics.
    h = _layernorm(h + attn, g1_ref[...], bt1_ref[...])

    # feed-forward: Linear(H, 4H) -> ReLU -> Linear(4H, H)
    ff = jnp.dot(h.astype(bf16), w1_ref[...], preferred_element_type=f32) + b1_ref[...]
    ff = jnp.maximum(ff, 0.0)
    ff = jnp.dot(ff.astype(bf16), w2_ref[...], preferred_element_type=f32) + b2_ref[...]
    h = _layernorm(h + ff, g2_ref[...], bt2_ref[...])

    # output_net: Linear(H, H//2) -> ReLU -> Linear(H//2, A_pad)
    z = jnp.dot(h.astype(bf16), wh_ref[...], preferred_element_type=f32) + bh_ref[...]
    z = jnp.maximum(z, 0.0)

    # wa is pre-scaled by 1/temperature on the host; maskb folds the output
    # bias, the action mask (-1e9 fill) and padded-column masking (all scaled
    # by 1/temperature) into a single additive term.
    logits = jnp.dot(z.astype(bf16), wa_ref[...], preferred_element_type=f32) + maskb_ref[...]

    # Numerically stable softmax over the (padded) action axis; masked / padded
    # columns sit at ~-1e9/T so their exp() underflows to exactly 0.
    m = jnp.max(logits, axis=-1, keepdims=True)
    e = jnp.exp(logits - m)
    out_ref[...] = (e / jnp.sum(e, axis=-1, keepdims=True)).astype(out_ref.dtype)


def init_params(key, state_dim, hidden_dim, action_dim):
    """Deterministic synthetic parameters (Linear weights stored as [in, out]).

    wq/bq/wk/bk are kept for parity with the PyTorch module's parameter set
    but are never used: with seq_len == 1 they cannot affect the output.
    """
    H, Hh, F = hidden_dim, hidden_dim // 2, hidden_dim * 4
    ks = jax.random.split(key, 16)
    n = lambda k, shp: (0.02 * jax.random.normal(k, shp)).astype(jnp.float32)
    return {
        "wp": n(ks[0], (state_dim, H)), "bp": n(ks[1], (1, H)),
        "wq": n(ks[2], (H, H)),         "bq": n(ks[3], (1, H)),   # unused
        "wk": n(ks[4], (H, H)),         "bk": n(ks[5], (1, H)),   # unused
        "wv": n(ks[6], (H, H)),         "bv": n(ks[7], (1, H)),
        "wo": n(ks[8], (H, H)),         "bo": n(ks[9], (1, H)),
        "g1": jnp.ones((1, H), jnp.float32), "bt1": jnp.zeros((1, H), jnp.float32),
        "w1": n(ks[10], (H, F)),        "b1": n(ks[11], (1, F)),
        "w2": n(ks[12], (F, H)),        "b2": n(ks[13], (1, H)),
        "g2": jnp.ones((1, H), jnp.float32), "bt2": jnp.zeros((1, H), jnp.float32),
        "wh": n(ks[14], (H, Hh)),       "bh": jnp.zeros((1, Hh), jnp.float32),
        "wa": n(ks[15], (Hh, action_dim)), "ba": jnp.zeros((1, action_dim), jnp.float32),
    }


def actor_net_reference(params, x, mask=None, temperature=1.0):
    """Pure-JAX f32 reference (same math, no padding / bf16 / fusions)."""
    h = x @ params["wp"] + params["bp"]
    v = h @ params["wv"] + params["bv"]
    attn = v @ params["wo"] + params["bo"]
    h = _layernorm(h + attn, params["g1"], params["bt1"])
    ff = jnp.maximum(h @ params["w1"] + params["b1"], 0.0)
    h = _layernorm(h + ff @ params["w2"] + params["b2"], params["g2"], params["bt2"])
    z = jnp.maximum(h @ params["wh"] + params["bh"], 0.0)
    logits = z @ params["wa"] + params["ba"]
    if mask is not None:
        m = jnp.asarray(mask)
        if m.ndim == 1:
            m = jnp.broadcast_to(m[None, :], logits.shape)
        logits = jnp.where(m, logits, -1e9)
    return jax.nn.softmax(logits / temperature, axis=-1)


# Cached capability probe: does this Pallas build accept pl.Buffered(1) as a
# pipeline_mode on pallas_call BlockSpecs (single-buffered resident weights)?
_SINGLE_BUFFER_OK = None


def actor_net_forward(params, x, mask=None, temperature=1.0,
                      batch_tile=256, vmem_limit_bytes=48 * 1024 * 1024):
    """ActorNet forward via Pallas (eager wrapper).

    batch_tile: per-grid-step batch rows. 256-512 is a good default for
    v7x/v5e; on v6e raise to 512-1024 together with vmem_limit_bytes ~= 96 MiB.
    Note: if every entry of a mask row is 0, all logits sit at -1e9/T and the
    (padded) softmax returns a near-uniform row whose real-action slice sums
    to A/A_pad < 1 -- same degenerate caveat as the PyTorch code.
    """
    global _SINGLE_BUFFER_OK
    f32, bf16 = jnp.float32, jnp.bfloat16

    x = jnp.asarray(x, f32)
    B, S = x.shape
    H = params["wp"].shape[1]
    F = params["w1"].shape[1]
    Hh = params["wh"].shape[1]
    A = params["ba"].shape[-1]
    A_pad = _round_up(A, 128)           # lane-dense logits / unmasked stores

    # Batch tiling: 256-aligned tiles (full MXU M occupancy) and >= 2 grid
    # steps whenever B > 256 so ("parallel",) megacore sharding can keep both
    # v7x TensorCores busy. Tiny batches stay one small 8-aligned tile.
    if B <= 256:
        TB = _round_up(max(B, 8), 8)
    else:
        TB = max(256, min(_round_up(batch_tile, 256), _round_up((B + 1) // 2, 256)))
    B_pad = _round_up(B, TB)
    grid = (B_pad // TB,)

    if B_pad != B:                       # pad batch rows only (feature dim untouched)
        x = jnp.pad(x, ((0, B_pad - B), (0, 0)))

    # --- host-side weight prep (one-time, f32 math, then bf16 cast) ---
    # NOTE: extreme temperature annealing (T < ~1e-7) can overflow the scaled
    # weights/fill, exactly like the reference's division would.
    inv_t = 1.0 / float(temperature)

    wp = params["wp"].astype(bf16)
    wvo = (params["wv"].astype(f32) @ params["wo"].astype(f32)).astype(bf16)
    bvo = params["bv"].astype(f32) @ params["wo"].astype(f32) + params["bo"].astype(f32)
    w1, w2 = params["w1"].astype(bf16), params["w2"].astype(bf16)
    wh = params["wh"].astype(bf16)

    # Final projection pre-scaled by 1/temperature, zero-padded to A_pad lanes.
    wa = jnp.zeros((Hh, A_pad), f32).at[:, :A].set(params["wa"].astype(f32) * inv_t)
    wa = wa.astype(bf16)

    # Additive epilogue bias: output bias + action mask (-1e9 fill) + padded
    # column masking, all pre-scaled by 1/temperature.  1-D / None masks stay a
    # single [1, A_pad] row (broadcast in-kernel); 2-D masks become per-row.
    ba_scaled = params["ba"].astype(f32) * inv_t                     # [1, A]
    neg = jnp.float32(-1e9 * inv_t)
    if mask is None:
        mask_bias = jnp.full((1, A_pad), neg, f32).at[:, :A].set(ba_scaled)
    else:
        m = jnp.asarray(mask).astype(bool)
        if m.ndim == 1:
            row = jnp.where(m[None, :], ba_scaled, neg)
            mask_bias = jnp.full((1, A_pad), neg, f32).at[:, :A].set(row)
        else:
            rows = jnp.where(m, ba_scaled, neg)                      # [B, A]
            mask_bias = jnp.full((B_pad, A_pad), neg, f32).at[:B, :A].set(rows)
    mask_rows = mask_bias.shape[0]

    args = (x,
            wp, params["bp"].astype(f32),
            wvo, bvo,
            params["g1"].astype(f32), params["bt1"].astype(f32),
            w1, params["b1"].astype(f32), w2, params["b2"].astype(f32),
            params["g2"].astype(f32), params["bt2"].astype(f32),
            wh, params["bh"].astype(f32), wa,
            mask_bias)

    def build_and_run(single_buffer_weights):
        if single_buffer_weights:
            # Constant block index across the grid -> single buffer is enough;
            # frees ~half the resident-weight VMEM vs. default double-buffering.
            const = lambda shape: pl.BlockSpec(shape, lambda i: (0, 0),
                                               pipeline_mode=pl.Buffered(1))
        else:
            const = lambda shape: pl.BlockSpec(shape, lambda i: (0, 0))

        if mask_rows == 1:
            maskb_spec = const((1, A_pad))
        else:
            maskb_spec = pl.BlockSpec((TB, A_pad), lambda i: (i, 0))

        in_specs = [
            pl.BlockSpec((TB, S), lambda i: (i, 0)),   # x tile (batch grid), full S
            const((S, H)), const((1, H)),              # wp, bp
            const((H, H)), const((1, H)),              # wvo, bvo (fused V+out proj)
            const((1, H)), const((1, H)),              # g1, bt1
            const((H, F)), const((1, F)),              # w1, b1
            const((F, H)), const((1, H)),              # w2, b2
            const((1, H)), const((1, H)),              # g2, bt2
            const((H, Hh)), const((1, Hh)),            # wh, bh
            const((Hh, A_pad)),                        # wa (temperature-scaled)
            maskb_spec,                                # additive mask/bias term
        ]

        out = pl.pallas_call(
            actor_net_kernel,
            out_shape=jax.ShapeDtypeStruct((B_pad, A_pad), f32),
            grid=grid,
            in_specs=in_specs,
            out_specs=pl.BlockSpec((TB, A_pad), lambda i: (i, 0)),
            compiler_params=pltpu.CompilerParams(
                dimension_semantics=("parallel",),     # v7x: shard batch on 2 TCs
                vmem_limit_bytes=vmem_limit_bytes),
        )(*args)
        return jax.block_until_ready(out)

    if _SINGLE_BUFFER_OK is None:
        try:
            out = build_and_run(True)
            _SINGLE_BUFFER_OK = True
        except Exception:                     # Buffered(1) unsupported here
            _SINGLE_BUFFER_OK = False
            out = build_and_run(False)
    else:
        out = build_and_run(_SINGLE_BUFFER_OK)

    return out[:B, :A]


if __name__ == "__main__":
    # Small, self-consistent shapes (scaled down from state_dim=3049, hidden=512).
    STATE_DIM, HIDDEN_DIM, ACTION_DIM, BATCH = 64, 32, 16, 2

    key = jax.random.PRNGKey(0)
    k_param, k_x, k_m = jax.random.split(key, 3)
    params = init_params(k_param, STATE_DIM, HIDDEN_DIM, ACTION_DIM)
    x = jax.random.normal(k_x, (BATCH, STATE_DIM), dtype=jnp.float32)

    # No mask, temperature = 1.0
    probs = jax.block_until_ready(actor_net_forward(params, x, temperature=1.0))
    ref = actor_net_reference(params, x, temperature=1.0)
    assert probs.shape == (BATCH, ACTION_DIM)
    assert bool(jnp.all(jnp.isfinite(probs)))
    assert bool(jnp.allclose(jnp.sum(probs, axis=-1), 1.0, atol=1e-5))
    assert bool(jnp.allclose(probs, ref, atol=2e-2))   # bf16 weights vs f32 reference

    # 1-D action mask (broadcast across the batch) and annealed temperature
    mask1d = (jnp.arange(ACTION_DIM) % 3 != 0)
    probs_m = jax.block_until_ready(
        actor_net_forward(params, x, mask=mask1d, temperature=0.7))
    ref_m = actor_net_reference(params, x, mask=mask1d, temperature=0.7)
    assert bool(jnp.allclose(jnp.sum(probs_m, axis=-1), 1.0, atol=1e-5))
    assert bool(jnp.all(probs_m[:, ::3] < 1e-6))       # masked actions get ~0 prob
    assert bool(jnp.allclose(probs_m, ref_m, atol=2e-2))

    # 2-D per-row mask path (per-row additive bias tile)
    mask2d = (jax.random.uniform(k_m, (BATCH, ACTION_DIM)) > 0.3).at[:, 0].set(True)
    probs_2 = jax.block_until_ready(
        actor_net_forward(params, x, mask=mask2d, temperature=1.0))
    ref_2 = actor_net_reference(params, x, mask=mask2d, temperature=1.0)
    assert bool(jnp.allclose(jnp.sum(probs_2, axis=-1), 1.0, atol=1e-5))
    assert bool(jnp.allclose(probs_2, ref_2, atol=2e-2))

    print("KERNEL_OK")
</pallas_src>

<mosaic_0001>
module attributes {stable_mosaic.version = 11 : i64} {
  func.func @actor_net_kernel(%arg0: i32, %arg1: memref<8x64xf32, #tpu.memory_space<vmem>>, %arg2: memref<64x32xbf16, #tpu.memory_space<vmem>>, %arg3: memref<1x32xf32, #tpu.memory_space<vmem>>, %arg4: memref<32x32xbf16, #tpu.memory_space<vmem>>, %arg5: memref<1x32xf32, #tpu.memory_space<vmem>>, %arg6: memref<1x32xf32, #tpu.memory_space<vmem>>, %arg7: memref<1x32xf32, #tpu.memory_space<vmem>>, %arg8: memref<32x128xbf16, #tpu.memory_space<vmem>>, %arg9: memref<1x128xf32, #tpu.memory_space<vmem>>, %arg10: memref<128x32xbf16, #tpu.memory_space<vmem>>, %arg11: memref<1x32xf32, #tpu.memory_space<vmem>>, %arg12: memref<1x32xf32, #tpu.memory_space<vmem>>, %arg13: memref<1x32xf32, #tpu.memory_space<vmem>>, %arg14: memref<32x16xbf16, #tpu.memory_space<vmem>>, %arg15: memref<1x16xf32, #tpu.memory_space<vmem>>, %arg16: memref<16x128xbf16, #tpu.memory_space<vmem>>, %arg17: memref<1x128xf32, #tpu.memory_space<vmem>>, %arg18: memref<8x128xf32, #tpu.memory_space<vmem>>) attributes {dimension_semantics = [#tpu.dimension_semantics<parallel>], iteration_bounds = array<i64: 1>, scalar_prefetch = 0 : i64, scratch_operands = 0 : i64, tpu.core_type = #tpu.core_type<tc>, window_params = [{transform_indices = @transform_0, window_bounds = array<i64: 8, 64>}, {pipeline_mode = #tpu.pipeline_mode<synchronous>, transform_indices = @transform_1, window_bounds = array<i64: 64, 32>}, {pipeline_mode = #tpu.pipeline_mode<synchronous>, transform_indices = @transform_2, window_bounds = array<i64: 1, 32>}, {pipeline_mode = #tpu.pipeline_mode<synchronous>, transform_indices = @transform_3, window_bounds = array<i64: 32, 32>}, {pipeline_mode = #tpu.pipeline_mode<synchronous>, transform_indices = @transform_4, window_bounds = array<i64: 1, 32>}, {pipeline_mode = #tpu.pipeline_mode<synchronous>, transform_indices = @transform_5, window_bounds = array<i64: 1, 32>}, {pipeline_mode = #tpu.pipeline_mode<synchronous>, transform_indices = @transform_6, window_bounds = array<i64: 1, 32>}, {pipeline_mode = #tpu.pipeline_mode<synchronous>, transform_indices = @transform_7, window_bounds = array<i64: 32, 128>}, {pipeline_mode = #tpu.pipeline_mode<synchronous>, transform_indices = @transform_8, window_bounds = array<i64: 1, 128>}, {pipeline_mode = #tpu.pipeline_mode<synchronous>, transform_indices = @transform_9, window_bounds = array<i64: 128, 32>}, {pipeline_mode = #tpu.pipeline_mode<synchronous>, transform_indices = @transform_10, window_bounds = array<i64: 1, 32>}, {pipeline_mode = #tpu.pipeline_mode<synchronous>, transform_indices = @transform_11, window_bounds = array<i64: 1, 32>}, {pipeline_mode = #tpu.pipeline_mode<synchronous>, transform_indices = @transform_12, window_bounds = array<i64: 1, 32>}, {pipeline_mode = #tpu.pipeline_mode<synchronous>, transform_indices = @transform_13, window_bounds = array<i64: 32, 16>}, {pipeline_mode = #tpu.pipeline_mode<synchronous>, transform_indices = @transform_14, window_bounds = array<i64: 1, 16>}, {pipeline_mode = #tpu.pipeline_mode<synchronous>, transform_indices = @transform_15, window_bounds = array<i64: 16, 128>}, {pipeline_mode = #tpu.pipeline_mode<synchronous>, transform_indices = @transform_16, window_bounds = array<i64: 1, 128>}, {transform_indices = @transform_17, window_bounds = array<i64: 8, 128>}]} {
    %c0 = arith.constant 0 : index
    %c0_0 = arith.constant 0 : index
    %0 = vector.load %arg1[%c0, %c0_0] : memref<8x64xf32, #tpu.memory_space<vmem>>, vector<8x64xf32>
    %1 = arith.truncf %0 : vector<8x64xf32> to vector<8x64xbf16>
    %c0_1 = arith.constant 0 : index
    %c0_2 = arith.constant 0 : index
    %2 = vector.load %arg2[%c0_1, %c0_2] : memref<64x32xbf16, #tpu.memory_space<vmem>>, vector<64x32xbf16>
    %cst = arith.constant dense<0.000000e+00> : vector<8x32xf32>
    %3 = tpu.matmul %1, %2, %cst {dimension_numbers = #tpu.dot_dimension_numbers<[1], [0], [0], [1], [0, 0, 1, 1], [], []>} : vector<8x64xbf16>, vector<64x32xbf16>, vector<8x32xf32> -> vector<8x32xf32>
    %c0_3 = arith.constant 0 : index
    %c0_4 = arith.constant 0 : index
    %4 = vector.load %arg3[%c0_3, %c0_4] : memref<1x32xf32, #tpu.memory_space<vmem>>, vector<1x32xf32>
    %5 = vector.broadcast %4 : vector<1x32xf32> to vector<8x32xf32>
    %6 = arith.addf %3, %5 : vector<8x32xf32>
    %7 = arith.truncf %6 : vector<8x32xf32> to vector<8x32xbf16>
    %c0_5 = arith.constant 0 : index
    %c0_6 = arith.constant 0 : index
    %8 = vector.load %arg4[%c0_5, %c0_6] : memref<32x32xbf16, #tpu.memory_space<vmem>>, vector<32x32xbf16>
    %cst_7 = arith.constant dense<0.000000e+00> : vector<8x32xf32>
    %9 = tpu.matmul %7, %8, %cst_7 {dimension_numbers = #tpu.dot_dimension_numbers<[1], [0], [0], [1], [0, 0, 1, 1], [], []>} : vector<8x32xbf16>, vector<32x32xbf16>, vector<8x32xf32> -> vector<8x32xf32>
    %c0_8 = arith.constant 0 : index
    %c0_9 = arith.constant 0 : index
    %10 = vector.load %arg5[%c0_8, %c0_9] : memref<1x32xf32, #tpu.memory_space<vmem>>, vector<1x32xf32>
    %11 = vector.broadcast %10 : vector<1x32xf32> to vector<8x32xf32>
    %12 = arith.addf %9, %11 : vector<8x32xf32>
    %13 = arith.addf %6, %12 : vector<8x32xf32>
    %c0_10 = arith.constant 0 : index
    %c0_11 = arith.constant 0 : index
    %14 = vector.load %arg6[%c0_10, %c0_11] : memref<1x32xf32, #tpu.memory_space<vmem>>, vector<1x32xf32>
    %c0_12 = arith.constant 0 : index
    %c0_13 = arith.constant 0 : index
    %15 = vector.load %arg7[%c0_12, %c0_13] : memref<1x32xf32, #tpu.memory_space<vmem>>, vector<1x32xf32>
    %cst_14 = arith.constant dense<0.000000e+00> : vector<8xf32>
    %16 = vector.multi_reduction <add>, %13, %cst_14 [1] : vector<8x32xf32> to vector<8xf32>
    %17 = vector.shape_cast %16 : vector<8xf32> to vector<8x1xf32>
    %cst_15 = arith.constant 3.200000e+01 : f32
    %18 = vector.broadcast %cst_15 : f32 to vector<8x1xf32>
    %19 = arith.divf %17, %18 : vector<8x1xf32>
    %20 = arith.mulf %13, %13 : vector<8x32xf32>
    %cst_16 = arith.constant dense<0.000000e+00> : vector<8xf32>
    %21 = vector.multi_reduction <add>, %20, %cst_16 [1] : vector<8x32xf32> to vector<8xf32>
    %22 = vector.shape_cast %21 : vector<8xf32> to vector<8x1xf32>
    %cst_17 = arith.constant 3.200000e+01 : f32
    %23 = vector.broadcast %cst_17 : f32 to vector<8x1xf32>
    %24 = arith.divf %22, %23 : vector<8x1xf32>
    %25 = arith.mulf %19, %19 : vector<8x1xf32>
    %26 = arith.subf %24, %25 : vector<8x1xf32>
    %27 = vector.broadcast %19 : vector<8x1xf32> to vector<8x32xf32>
    %28 = arith.subf %13, %27 : vector<8x32xf32>
    %cst_18 = arith.constant 9.99999974E-6 : f32
    %29 = vector.broadcast %cst_18 : f32 to vector<8x1xf32>
    %30 = arith.addf %26, %29 : vector<8x1xf32>
    %31 = math.rsqrt %30 : vector<8x1xf32>
    %32 = vector.broadcast %31 : vector<8x1xf32> to vector<8x32xf32>
    %33 = arith.mulf %28, %32 : vector<8x32xf32>
    %34 = vector.broadcast %14 : vector<1x32xf32> to vector<8x32xf32>
    %35 = arith.mulf %33, %34 : vector<8x32xf32>
    %36 = vector.broadcast %15 : vector<1x32xf32> to vector<8x32xf32>
    %37 = arith.addf %35, %36 : vector<8x32xf32>
    %38 = arith.truncf %37 : vector<8x32xf32> to vector<8x32xbf16>
    %c0_19 = arith.constant 0 : index
    %c0_20 = arith.constant 0 : index
    %39 = vector.load %arg8[%c0_19, %c0_20] : memref<32x128xbf16, #tpu.memory_space<vmem>>, vector<32x128xbf16>
    %cst_21 = arith.constant dense<0.000000e+00> : vector<8x128xf32>
    %40 = tpu.matmul %38, %39, %cst_21 {dimension_numbers = #tpu.dot_dimension_numbers<[1], [0], [0], [1], [0, 0, 1, 1], [], []>} : vector<8x32xbf16>, vector<32x128xbf16>, vector<8x128xf32> -> vector<8x128xf32>
    %c0_22 = arith.constant 0 : index
    %c0_23 = arith.constant 0 : index
    %41 = vector.load %arg9[%c0_22, %c0_23] : memref<1x128xf32, #tpu.memory_space<vmem>>, vector<1x128xf32>
    %42 = vector.broadcast %41 : vector<1x128xf32> to vector<8x128xf32>
    %43 = arith.addf %40, %42 : vector<8x128xf32>
    %cst_24 = arith.constant 0.000000e+00 : f32
    %44 = vector.broadcast %cst_24 : f32 to vector<8x128xf32>
    %45 = arith.maximumf %43, %44 : vector<8x128xf32>
    %46 = arith.truncf %45 : vector<8x128xf32> to vector<8x128xbf16>
    %c0_25 = arith.constant 0 : index
    %c0_26 = arith.constant 0 : index
    %47 = vector.load %arg10[%c0_25, %c0_26] : memref<128x32xbf16, #tpu.memory_space<vmem>>, vector<128x32xbf16>
    %cst_27 = arith.constant dense<0.000000e+00> : vector<8x32xf32>
    %48 = tpu.matmul %46, %47, %cst_27 {dimension_numbers = #tpu.dot_dimension_numbers<[1], [0], [0], [1], [0, 0, 1, 1], [], []>} : vector<8x128xbf16>, vector<128x32xbf16>, vector<8x32xf32> -> vector<8x32xf32>
    %c0_28 = arith.constant 0 : index
    %c0_29 = arith.constant 0 : index
    %49 = vector.load %arg11[%c0_28, %c0_29] : memref<1x32xf32, #tpu.memory_space<vmem>>, vector<1x32xf32>
    %50 = vector.broadcast %49 : vector<1x32xf32> to vector<8x32xf32>
    %51 = arith.addf %48, %50 : vector<8x32xf32>
    %52 = arith.addf %37, %51 : vector<8x32xf32>
    %c0_30 = arith.constant 0 : index
    %c0_31 = arith.constant 0 : index
    %53 = vector.load %arg12[%c0_30, %c0_31] : memref<1x32xf32, #tpu.memory_space<vmem>>, vector<1x32xf32>
    %c0_32 = arith.constant 0 : index
    %c0_33 = arith.constant 0 : index
    %54 = vector.load %arg13[%c0_32, %c0_33] : memref<1x32xf32, #tpu.memory_space<vmem>>, vector<1x32xf32>
    %cst_34 = arith.constant dense<0.000000e+00> : vector<8xf32>
    %55 = vector.multi_reduction <add>, %52, %cst_34 [1] : vector<8x32xf32> to vector<8xf32>
    %56 = vector.shape_cast %55 : vector<8xf32> to vector<8x1xf32>
    %cst_35 = arith.constant 3.200000e+01 : f32
    %57 = vector.broadcast %cst_35 : f32 to vector<8x1xf32>
    %58 = arith.divf %56, %57 : vector<8x1xf32>
    %59 = arith.mulf %52, %52 : vector<8x32xf32>
    %cst_36 = arith.constant dense<0.000000e+00> : vector<8xf32>
    %60 = vector.multi_reduction <add>, %59, %cst_36 [1] : vector<8x32xf32> to vector<8xf32>
    %61 = vector.shape_cast %60 : vector<8xf32> to vector<8x1xf32>
    %cst_37 = arith.constant 3.200000e+01 : f32
    %62 = vector.broadcast %cst_37 : f32 to vector<8x1xf32>
    %63 = arith.divf %61, %62 : vector<8x1xf32>
    %64 = arith.mulf %58, %58 : vector<8x1xf32>
    %65 = arith.subf %63, %64 : vector<8x1xf32>
    %66 = vector.broadcast %58 : vector<8x1xf32> to vector<8x32xf32>
    %67 = arith.subf %52, %66 : vector<8x32xf32>
    %cst_38 = arith.constant 9.99999974E-6 : f32
    %68 = vector.broadcast %cst_38 : f32 to vector<8x1xf32>
    %69 = arith.addf %65, %68 : vector<8x1xf32>
    %70 = math.rsqrt %69 : vector<8x1xf32>
    %71 = vector.broadcast %70 : vector<8x1xf32> to vector<8x32xf32>
    %72 = arith.mulf %67, %71 : vector<8x32xf32>
    %73 = vector.broadcast %53 : vector<1x32xf32> to vector<8x32xf32>
    %74 = arith.mulf %72, %73 : vector<8x32xf32>
    %75 = vector.broadcast %54 : vector<1x32xf32> to vector<8x32xf32>
    %76 = arith.addf %74, %75 : vector<8x32xf32>
    %77 = arith.truncf %76 : vector<8x32xf32> to vector<8x32xbf16>
    %c0_39 = arith.constant 0 : index
    %c0_40 = arith.constant 0 : index
    %78 = vector.load %arg14[%c0_39, %c0_40] : memref<32x16xbf16, #tpu.memory_space<vmem>>, vector<32x16xbf16>
    %cst_41 = arith.constant dense<0.000000e+00> : vector<8x16xf32>
    %79 = tpu.matmul %77, %78, %cst_41 {dimension_numbers = #tpu.dot_dimension_numbers<[1], [0], [0], [1], [0, 0, 1, 1], [], []>} : vector<8x32xbf16>, vector<32x16xbf16>, vector<8x16xf32> -> vector<8x16xf32>
    %c0_42 = arith.constant 0 : index
    %c0_43 = arith.constant 0 : index
    %80 = vector.load %arg15[%c0_42, %c0_43] : memref<1x16xf32, #tpu.memory_space<vmem>>, vector<1x16xf32>
    %81 = vector.broadcast %80 : vector<1x16xf32> to vector<8x16xf32>
    %82 = arith.addf %79, %81 : vector<8x16xf32>
    %cst_44 = arith.constant 0.000000e+00 : f32
    %83 = vector.broadcast %cst_44 : f32 to vector<8x16xf32>
    %84 = arith.maximumf %82, %83 : vector<8x16xf32>
    %85 = arith.truncf %84 : vector<8x16xf32> to vector<8x16xbf16>
    %c0_45 = arith.constant 0 : index
    %c0_46 = arith.constant 0 : index
    %86 = vector.load %arg16[%c0_45, %c0_46] : memref<16x128xbf16, #tpu.memory_space<vmem>>, vector<16x128xbf16>
    %cst_47 = arith.constant dense<0.000000e+00> : vector<8x128xf32>
    %87 = tpu.matmul %85, %86, %cst_47 {dimension_numbers = #tpu.dot_dimension_numbers<[1], [0], [0], [1], [0, 0, 1, 1], [], []>} : vector<8x16xbf16>, vector<16x128xbf16>, vector<8x128xf32> -> vector<8x128xf32>
    %c0_48 = arith.constant 0 : index
    %c0_49 = arith.constant 0 : index
    %88 = vector.load %arg17[%c0_48, %c0_49] : memref<1x128xf32, #tpu.memory_space<vmem>>, vector<1x128xf32>
    %89 = vector.broadcast %88 : vector<1x128xf32> to vector<8x128xf32>
    %90 = arith.addf %87, %89 : vector<8x128xf32>
    %cst_50 = arith.constant dense<0xFF800000> : vector<8xf32>
    %91 = vector.multi_reduction <maximumf>, %90, %cst_50 [1] : vector<8x128xf32> to vector<8xf32>
    %92 = vector.shape_cast %91 : vector<8xf32> to vector<8x1xf32>
    %93 = vector.broadcast %92 : vector<8x1xf32> to vector<8x128xf32>
    %94 = arith.subf %90, %93 : vector<8x128xf32>
    %95 = math.exp %94 : vector<8x128xf32>
    %cst_51 = arith.constant dense<0.000000e+00> : vector<8xf32>
    %96 = vector.multi_reduction <add>, %95, %cst_51 [1] : vector<8x128xf32> to vector<8xf32>
    %97 = vector.shape_cast %96 : vector<8xf32> to vector<8x1xf32>
    %98 = vector.broadcast %97 : vector<8x1xf32> to vector<8x128xf32>
    %99 = arith.divf %95, %98 : vector<8x128xf32>
    %c0_52 = arith.constant 0 : index
    %c0_53 = arith.constant 0 : index
    %100 = vector.load %arg18[%c0_52, %c0_53] : memref<8x128xf32, #tpu.memory_space<vmem>>, vector<8x128xf32>
    tpu.vector_store %arg18[%c0_52, %c0_53], %99 {strides = array<i32>} : memref<8x128xf32, #tpu.memory_space<vmem>>, vector<8x128xf32>,
    return
  }
  func.func @transform_0(%arg0: i32) -> (i32, i32) {
    %c0_i32 = arith.constant 0 : i32
    %c0_i32_0 = arith.constant 0 : i32
    return %arg0, %c0_i32 : i32, i32
  }
  func.func @transform_1(%arg0: i32) -> (i32, i32) {
    %c0_i32 = arith.constant 0 : i32
    %c0_i32_0 = arith.constant 0 : i32
    %c0_i32_1 = arith.constant 0 : i32
    return %c0_i32, %c0_i32_0 : i32, i32
  }
  func.func @transform_2(%arg0: i32) -> (i32, i32) {
    %c0_i32 = arith.constant 0 : i32
    %c0_i32_0 = arith.constant 0 : i32
    %c0_i32_1 = arith.constant 0 : i32
    return %c0_i32, %c0_i32_0 : i32, i32
  }
  func.func @transform_3(%arg0: i32) -> (i32, i32) {
    %c0_i32 = arith.constant 0 : i32
    %c0_i32_0 = arith.constant 0 : i32
    %c0_i32_1 = arith.constant 0 : i32
    return %c0_i32, %c0_i32_0 : i32, i32
  }
  func.func @transform_4(%arg0: i32) -> (i32, i32) {
    %c0_i32 = arith.constant 0 : i32
    %c0_i32_0 = arith.constant 0 : i32
    %c0_i32_1 = arith.constant 0 : i32
    return %c0_i32, %c0_i32_0 : i32, i32
  }
  func.func @transform_5(%arg0: i32) -> (i32, i32) {
    %c0_i32 = arith.constant 0 : i32
    %c0_i32_0 = arith.constant 0 : i32
    %c0_i32_1 = arith.constant 0 : i32
    return %c0_i32, %c0_i32_0 : i32, i32
  }
  func.func @transform_6(%arg0: i32) -> (i32, i32) {
    %c0_i32 = arith.constant 0 : i32
    %c0_i32_0 = arith.constant 0 : i32
    %c0_i32_1 = arith.constant 0 : i32
    return %c0_i32, %c0_i32_0 : i32, i32
  }
  func.func @transform_7(%arg0: i32) -> (i32, i32) {
    %c0_i32 = arith.constant 0 : i32
    %c0_i32_0 = arith.constant 0 : i32
    %c0_i32_1 = arith.constant 0 : i32
    return %c0_i32, %c0_i32_0 : i32, i32
  }
  func.func @transform_8(%arg0: i32) -> (i32, i32) {
    %c0_i32 = arith.constant 0 : i32
    %c0_i32_0 = arith.constant 0 : i32
    %c0_i32_1 = arith.constant 0 : i32
    return %c0_i32, %c0_i32_0 : i32, i32
  }
  func.func @transform_9(%arg0: i32) -> (i32, i32) {
    %c0_i32 = arith.constant 0 : i32
    %c0_i32_0 = arith.constant 0 : i32
    %c0_i32_1 = arith.constant 0 : i32
    return %c0_i32, %c0_i32_0 : i32, i32
  }
  func.func @transform_10(%arg0: i32) -> (i32, i32) {
    %c0_i32 = arith.constant 0 : i32
    %c0_i32_0 = arith.constant 0 : i32
    %c0_i32_1 = arith.constant 0 : i32
    return %c0_i32, %c0_i32_0 : i32, i32
  }
  func.func @transform_11(%arg0: i32) -> (i32, i32) {
    %c0_i32 = arith.constant 0 : i32
    %c0_i32_0 = arith.constant 0 : i32
    %c0_i32_1 = arith.constant 0 : i32
    return %c0_i32, %c0_i32_0 : i32, i32
  }
  func.func @transform_12(%arg0: i32) -> (i32, i32) {
    %c0_i32 = arith.constant 0 : i32
    %c0_i32_0 = arith.constant 0 : i32
    %c0_i32_1 = arith.constant 0 : i32
    return %c0_i32, %c0_i32_0 : i32, i32
  }
  func.func @transform_13(%arg0: i32) -> (i32, i32) {
    %c0_i32 = arith.constant 0 : i32
    %c0_i32_0 = arith.constant 0 : i32
    %c0_i32_1 = arith.constant 0 : i32
    return %c0_i32, %c0_i32_0 : i32, i32
  }
  func.func @transform_14(%arg0: i32) -> (i32, i32) {
    %c0_i32 = arith.constant 0 : i32
    %c0_i32_0 = arith.constant 0 : i32
    %c0_i32_1 = arith.constant 0 : i32
    return %c0_i32, %c0_i32_0 : i32, i32
  }
  func.func @transform_15(%arg0: i32) -> (i32, i32) {
    %c0_i32 = arith.constant 0 : i32
    %c0_i32_0 = arith.constant 0 : i32
    %c0_i32_1 = arith.constant 0 : i32
    return %c0_i32, %c0_i32_0 : i32, i32
  }
  func.func @transform_16(%arg0: i32) -> (i32, i32) {
    %c0_i32 = arith.constant 0 : i32
    %c0_i32_0 = arith.constant 0 : i32
    %c0_i32_1 = arith.constant 0 : i32
    return %c0_i32, %c0_i32_0 : i32, i32
  }
  func.func @transform_17(%arg0: i32) -> (i32, i32) {
    %c0_i32 = arith.constant 0 : i32
    %c0_i32_0 = arith.constant 0 : i32
    return %arg0, %c0_i32 : i32, i32
  }
}

module attributes {stable_mosaic.version = 11 : i64} {
  func.func @actor_net_kernel(%arg0: i32, %arg1: memref<8x64xf32, #tpu.memory_space<vmem>>, %arg2: memref<64x32xbf16, #tpu.memory_space<vmem>>, %arg3: memref<1x32xf32, #tpu.memory_space<vmem>>, %arg4: memref<32x32xbf16, #tpu.memory_space<vmem>>, %arg5: memref<1x32xf32, #tpu.memory_space<vmem>>, %arg6: memref<1x32xf32, #tpu.memory_space<vmem>>, %arg7: memref<1x32xf32, #tpu.memory_space<vmem>>, %arg8: memref<32x128xbf16, #tpu.memory_space<vmem>>, %arg9: memref<1x128xf32, #tpu.memory_space<vmem>>, %arg10: memref<128x32xbf16, #tpu.memory_space<vmem>>, %arg11: memref<1x32xf32, #tpu.memory_space<vmem>>, %arg12: memref<1x32xf32, #tpu.memory_space<vmem>>, %arg13: memref<1x32xf32, #tpu.memory_space<vmem>>, %arg14: memref<32x16xbf16, #tpu.memory_space<vmem>>, %arg15: memref<1x16xf32, #tpu.memory_space<vmem>>, %arg16: memref<16x128xbf16, #tpu.memory_space<vmem>>, %arg17: memref<1x128xf32, #tpu.memory_space<vmem>>, %arg18: memref<8x128xf32, #tpu.memory_space<vmem>>) attributes {dimension_semantics = [#tpu.dimension_semantics<parallel>], iteration_bounds = array<i64: 1>, scalar_prefetch = 0 : i64, scratch_operands = 0 : i64, tpu.core_type = #tpu.core_type<tc>, window_params = [{transform_indices = @transform_0, window_bounds = array<i64: 8, 64>}, {pipeline_mode = #tpu.pipeline_mode<synchronous>, transform_indices = @transform_1, window_bounds = array<i64: 64, 32>}, {pipeline_mode = #tpu.pipeline_mode<synchronous>, transform_indices = @transform_2, window_bounds = array<i64: 1, 32>}, {pipeline_mode = #tpu.pipeline_mode<synchronous>, transform_indices = @transform_3, window_bounds = array<i64: 32, 32>}, {pipeline_mode = #tpu.pipeline_mode<synchronous>, transform_indices = @transform_4, window_bounds = array<i64: 1, 32>}, {pipeline_mode = #tpu.pipeline_mode<synchronous>, transform_indices = @transform_5, window_bounds = array<i64: 1, 32>}, {pipeline_mode = #tpu.pipeline_mode<synchronous>, transform_indices = @transform_6, window_bounds = array<i64: 1, 32>}, {pipeline_mode = #tpu.pipeline_mode<synchronous>, transform_indices = @transform_7, window_bounds = array<i64: 32, 128>}, {pipeline_mode = #tpu.pipeline_mode<synchronous>, transform_indices = @transform_8, window_bounds = array<i64: 1, 128>}, {pipeline_mode = #tpu.pipeline_mode<synchronous>, transform_indices = @transform_9, window_bounds = array<i64: 128, 32>}, {pipeline_mode = #tpu.pipeline_mode<synchronous>, transform_indices = @transform_10, window_bounds = array<i64: 1, 32>}, {pipeline_mode = #tpu.pipeline_mode<synchronous>, transform_indices = @transform_11, window_bounds = array<i64: 1, 32>}, {pipeline_mode = #tpu.pipeline_mode<synchronous>, transform_indices = @transform_12, window_bounds = array<i64: 1, 32>}, {pipeline_mode = #tpu.pipeline_mode<synchronous>, transform_indices = @transform_13, window_bounds = array<i64: 32, 16>}, {pipeline_mode = #tpu.pipeline_mode<synchronous>, transform_indices = @transform_14, window_bounds = array<i64: 1, 16>}, {pipeline_mode = #tpu.pipeline_mode<synchronous>, transform_indices = @transform_15, window_bounds = array<i64: 16, 128>}, {pipeline_mode = #tpu.pipeline_mode<synchronous>, transform_indices = @transform_16, window_bounds = array<i64: 1, 128>}, {transform_indices = @transform_17, window_bounds = array<i64: 8, 128>}]} {
    %c0 = arith.constant 0 : index
    %c0_0 = arith.constant 0 : index
    %0 = vector.load %arg1[%c0, %c0_0] : memref<8x64xf32, #tpu.memory_space<vmem>>, vector<8x64xf32>
    %1 = arith.truncf %0 : vector<8x64xf32> to vector<8x64xbf16>
    %c0_1 = arith.constant 0 : index
    %c0_2 = arith.constant 0 : index
    %2 = vector.load %arg2[%c0_1, %c0_2] : memref<64x32xbf16, #tpu.memory_space<vmem>>, vector<64x32xbf16>
    %cst = arith.constant dense<0.000000e+00> : vector<8x32xf32>
    %3 = tpu.matmul %1, %2, %cst {dimension_numbers = #tpu.dot_dimension_numbers<[1], [0], [0], [1], [0, 0, 1, 1], [], []>} : vector<8x64xbf16>, vector<64x32xbf16>, vector<8x32xf32> -> vector<8x32xf32>
    %c0_3 = arith.constant 0 : index
    %c0_4 = arith.constant 0 : index
    %4 = vector.load %arg3[%c0_3, %c0_4] : memref<1x32xf32, #tpu.memory_space<vmem>>, vector<1x32xf32>
    %5 = vector.broadcast %4 : vector<1x32xf32> to vector<8x32xf32>
    %6 = arith.addf %3, %5 : vector<8x32xf32>
    %7 = arith.truncf %6 : vector<8x32xf32> to vector<8x32xbf16>
    %c0_5 = arith.constant 0 : index
    %c0_6 = arith.constant 0 : index
    %8 = vector.load %arg4[%c0_5, %c0_6] : memref<32x32xbf16, #tpu.memory_space<vmem>>, vector<32x32xbf16>
    %cst_7 = arith.constant dense<0.000000e+00> : vector<8x32xf32>
    %9 = tpu.matmul %7, %8, %cst_7 {dimension_numbers = #tpu.dot_dimension_numbers<[1], [0], [0], [1], [0, 0, 1, 1], [], []>} : vector<8x32xbf16>, vector<32x32xbf16>, vector<8x32xf32> -> vector<8x32xf32>
    %c0_8 = arith.constant 0 : index
    %c0_9 = arith.constant 0 : index
    %10 = vector.load %arg5[%c0_8, %c0_9] : memref<1x32xf32, #tpu.memory_space<vmem>>, vector<1x32xf32>
    %11 = vector.broadcast %10 : vector<1x32xf32> to vector<8x32xf32>
    %12 = arith.addf %9, %11 : vector<8x32xf32>
    %13 = arith.addf %6, %12 : vector<8x32xf32>
    %c0_10 = arith.constant 0 : index
    %c0_11 = arith.constant 0 : index
    %14 = vector.load %arg6[%c0_10, %c0_11] : memref<1x32xf32, #tpu.memory_space<vmem>>, vector<1x32xf32>
    %c0_12 = arith.constant 0 : index
    %c0_13 = arith.constant 0 : index
    %15 = vector.load %arg7[%c0_12, %c0_13] : memref<1x32xf32, #tpu.memory_space<vmem>>, vector<1x32xf32>
    %cst_14 = arith.constant dense<0.000000e+00> : vector<8xf32>
    %16 = vector.multi_reduction <add>, %13, %cst_14 [1] : vector<8x32xf32> to vector<8xf32>
    %17 = vector.shape_cast %16 : vector<8xf32> to vector<8x1xf32>
    %cst_15 = arith.constant 3.200000e+01 : f32
    %18 = vector.broadcast %cst_15 : f32 to vector<8x1xf32>
    %19 = arith.divf %17, %18 : vector<8x1xf32>
    %20 = arith.mulf %13, %13 : vector<8x32xf32>
    %cst_16 = arith.constant dense<0.000000e+00> : vector<8xf32>
    %21 = vector.multi_reduction <add>, %20, %cst_16 [1] : vector<8x32xf32> to vector<8xf32>
    %22 = vector.shape_cast %21 : vector<8xf32> to vector<8x1xf32>
    %cst_17 = arith.constant 3.200000e+01 : f32
    %23 = vector.broadcast %cst_17 : f32 to vector<8x1xf32>
    %24 = arith.divf %22, %23 : vector<8x1xf32>
    %25 = arith.mulf %19, %19 : vector<8x1xf32>
    %26 = arith.subf %24, %25 : vector<8x1xf32>
    %27 = vector.broadcast %19 : vector<8x1xf32> to vector<8x32xf32>
    %28 = arith.subf %13, %27 : vector<8x32xf32>
    %cst_18 = arith.constant 9.99999974E-6 : f32
    %29 = vector.broadcast %cst_18 : f32 to vector<8x1xf32>
    %30 = arith.addf %26, %29 : vector<8x1xf32>
    %31 = math.rsqrt %30 : vector<8x1xf32>
    %32 = vector.broadcast %31 : vector<8x1xf32> to vector<8x32xf32>
    %33 = arith.mulf %28, %32 : vector<8x32xf32>
    %34 = vector.broadcast %14 : vector<1x32xf32> to vector<8x32xf32>
    %35 = arith.mulf %33, %34 : vector<8x32xf32>
    %36 = vector.broadcast %15 : vector<1x32xf32> to vector<8x32xf32>
    %37 = arith.addf %35, %36 : vector<8x32xf32>
    %38 = arith.truncf %37 : vector<8x32xf32> to vector<8x32xbf16>
    %c0_19 = arith.constant 0 : index
    %c0_20 = arith.constant 0 : index
    %39 = vector.load %arg8[%c0_19, %c0_20] : memref<32x128xbf16, #tpu.memory_space<vmem>>, vector<32x128xbf16>
    %cst_21 = arith.constant dense<0.000000e+00> : vector<8x128xf32>
    %40 = tpu.matmul %38, %39, %cst_21 {dimension_numbers = #tpu.dot_dimension_numbers<[1], [0], [0], [1], [0, 0, 1, 1], [], []>} : vector<8x32xbf16>, vector<32x128xbf16>, vector<8x128xf32> -> vector<8x128xf32>
    %c0_22 = arith.constant 0 : index
    %c0_23 = arith.constant 0 : index
    %41 = vector.load %arg9[%c0_22, %c0_23] : memref<1x128xf32, #tpu.memory_space<vmem>>, vector<1x128xf32>
    %42 = vector.broadcast %41 : vector<1x128xf32> to vector<8x128xf32>
    %43 = arith.addf %40, %42 : vector<8x128xf32>
    %cst_24 = arith.constant 0.000000e+00 : f32
    %44 = vector.broadcast %cst_24 : f32 to vector<8x128xf32>
    %45 = arith.maximumf %43, %44 : vector<8x128xf32>
    %46 = arith.truncf %45 : vector<8x128xf32> to vector<8x128xbf16>
    %c0_25 = arith.constant 0 : index
    %c0_26 = arith.constant 0 : index
    %47 = vector.load %arg10[%c0_25, %c0_26] : memref<128x32xbf16, #tpu.memory_space<vmem>>, vector<128x32xbf16>
    %cst_27 = arith.constant dense<0.000000e+00> : vector<8x32xf32>
    %48 = tpu.matmul %46, %47, %cst_27 {dimension_numbers = #tpu.dot_dimension_numbers<[1], [0], [0], [1], [0, 0, 1, 1], [], []>} : vector<8x128xbf16>, vector<128x32xbf16>, vector<8x32xf32> -> vector<8x32xf32>
    %c0_28 = arith.constant 0 : index
    %c0_29 = arith.constant 0 : index
    %49 = vector.load %arg11[%c0_28, %c0_29] : memref<1x32xf32, #tpu.memory_space<vmem>>, vector<1x32xf32>
    %50 = vector.broadcast %49 : vector<1x32xf32> to vector<8x32xf32>
    %51 = arith.addf %48, %50 : vector<8x32xf32>
    %52 = arith.addf %37, %51 : vector<8x32xf32>
    %c0_30 = arith.constant 0 : index
    %c0_31 = arith.constant 0 : index
    %53 = vector.load %arg12[%c0_30, %c0_31] : memref<1x32xf32, #tpu.memory_space<vmem>>, vector<1x32xf32>
    %c0_32 = arith.constant 0 : index
    %c0_33 = arith.constant 0 : index
    %54 = vector.load %arg13[%c0_32, %c0_33] : memref<1x32xf32, #tpu.memory_space<vmem>>, vector<1x32xf32>
    %cst_34 = arith.constant dense<0.000000e+00> : vector<8xf32>
    %55 = vector.multi_reduction <add>, %52, %cst_34 [1] : vector<8x32xf32> to vector<8xf32>
    %56 = vector.shape_cast %55 : vector<8xf32> to vector<8x1xf32>
    %cst_35 = arith.constant 3.200000e+01 : f32
    %57 = vector.broadcast %cst_35 : f32 to vector<8x1xf32>
    %58 = arith.divf %56, %57 : vector<8x1xf32>
    %59 = arith.mulf %52, %52 : vector<8x32xf32>
    %cst_36 = arith.constant dense<0.000000e+00> : vector<8xf32>
    %60 = vector.multi_reduction <add>, %59, %cst_36 [1] : vector<8x32xf32> to vector<8xf32>
    %61 = vector.shape_cast %60 : vector<8xf32> to vector<8x1xf32>
    %cst_37 = arith.constant 3.200000e+01 : f32
    %62 = vector.broadcast %cst_37 : f32 to vector<8x1xf32>
    %63 = arith.divf %61, %62 : vector<8x1xf32>
    %64 = arith.mulf %58, %58 : vector<8x1xf32>
    %65 = arith.subf %63, %64 : vector<8x1xf32>
    %66 = vector.broadcast %58 : vector<8x1xf32> to vector<8x32xf32>
    %67 = arith.subf %52, %66 : vector<8x32xf32>
    %cst_38 = arith.constant 9.99999974E-6 : f32
    %68 = vector.broadcast %cst_38 : f32 to vector<8x1xf32>
    %69 = arith.addf %65, %68 : vector<8x1xf32>
    %70 = math.rsqrt %69 : vector<8x1xf32>
    %71 = vector.broadcast %70 : vector<8x1xf32> to vector<8x32xf32>
    %72 = arith.mulf %67, %71 : vector<8x32xf32>
    %73 = vector.broadcast %53 : vector<1x32xf32> to vector<8x32xf32>
    %74 = arith.mulf %72, %73 : vector<8x32xf32>
    %75 = vector.broadcast %54 : vector<1x32xf32> to vector<8x32xf32>
    %76 = arith.addf %74, %75 : vector<8x32xf32>
    %77 = arith.truncf %76 : vector<8x32xf32> to vector<8x32xbf16>
    %c0_39 = arith.constant 0 : index
    %c0_40 = arith.constant 0 : index
    %78 = vector.load %arg14[%c0_39, %c0_40] : memref<32x16xbf16, #tpu.memory_space<vmem>>, vector<32x16xbf16>
    %cst_41 = arith.constant dense<0.000000e+00> : vector<8x16xf32>
    %79 = tpu.matmul %77, %78, %cst_41 {dimension_numbers = #tpu.dot_dimension_numbers<[1], [0], [0], [1], [0, 0, 1, 1], [], []>} : vector<8x32xbf16>, vector<32x16xbf16>, vector<8x16xf32> -> vector<8x16xf32>
    %c0_42 = arith.constant 0 : index
    %c0_43 = arith.constant 0 : index
    %80 = vector.load %arg15[%c0_42, %c0_43] : memref<1x16xf32, #tpu.memory_space<vmem>>, vector<1x16xf32>
    %81 = vector.broadcast %80 : vector<1x16xf32> to vector<8x16xf32>
    %82 = arith.addf %79, %81 : vector<8x16xf32>
    %cst_44 = arith.constant 0.000000e+00 : f32
    %83 = vector.broadcast %cst_44 : f32 to vector<8x16xf32>
    %84 = arith.maximumf %82, %83 : vector<8x16xf32>
    %85 = arith.truncf %84 : vector<8x16xf32> to vector<8x16xbf16>
    %c0_45 = arith.constant 0 : index
    %c0_46 = arith.constant 0 : index
    %86 = vector.load %arg16[%c0_45, %c0_46] : memref<16x128xbf16, #tpu.memory_space<vmem>>, vector<16x128xbf16>
    %cst_47 = arith.constant dense<0.000000e+00> : vector<8x128xf32>
    %87 = tpu.matmul %85, %86, %cst_47 {dimension_numbers = #tpu.dot_dimension_numbers<[1], [0], [0], [1], [0, 0, 1, 1], [], []>} : vector<8x16xbf16>, vector<16x128xbf16>, vector<8x128xf32> -> vector<8x128xf32>
    %c0_48 = arith.constant 0 : index
    %c0_49 = arith.constant 0 : index
    %88 = vector.load %arg17[%c0_48, %c0_49] : memref<1x128xf32, #tpu.memory_space<vmem>>, vector<1x128xf32>
    %89 = vector.broadcast %88 : vector<1x128xf32> to vector<8x128xf32>
    %90 = arith.addf %87, %89 : vector<8x128xf32>
    %cst_50 = arith.constant dense<0xFF800000> : vector<8xf32>
    %91 = vector.multi_reduction <maximumf>, %90, %cst_50 [1] : vector<8x128xf32> to vector<8xf32>
    %92 = vector.shape_cast %91 : vector<8xf32> to vector<8x1xf32>
    %93 = vector.broadcast %92 : vector<8x1xf32> to vector<8x128xf32>
    %94 = arith.subf %90, %93 : vector<8x128xf32>
    %95 = math.exp %94 : vector<8x128xf32>
    %cst_51 = arith.constant dense<0.000000e+00> : vector<8xf32>
    %96 = vector.multi_reduction <add>, %95, %cst_51 [1] : vector<8x128xf32> to vector<8xf32>
    %97 = vector.shape_cast %96 : vector<8xf32> to vector<8x1xf32>
    %98 = vector.broadcast %97 : vector<8x1xf32> to vector<8x128xf32>
    %99 = arith.divf %95, %98 : vector<8x128xf32>
    %c0_52 = arith.constant 0 : index
    %c0_53 = arith.constant 0 : index
    %100 = vector.load %arg18[%c0_52, %c0_53] : memref<8x128xf32, #tpu.memory_space<vmem>>, vector<8x128xf32>
    tpu.vector_store %arg18[%c0_52, %c0_53], %99 {strides = array<i32>} : memref<8x128xf32, #tpu.memory_space<vmem>>, vector<8x128xf32>,
    return
  }
  func.func @transform_0(%arg0: i32) -> (i32, i32) {
    %c0_i32 = arith.constant 0 : i32
    %c0_i32_0 = arith.constant 0 : i32
    return %arg0, %c0_i32 : i32, i32
  }
  func.func @transform_1(%arg0: i32) -> (i32, i32) {
    %c0_i32 = arith.constant 0 : i32
    %c0_i32_0 = arith.constant 0 : i32
    %c0_i32_1 = arith.constant 0 : i32
    return %c0_i32, %c0_i32_0 : i32, i32
  }
  func.func @transform_2(%arg0: i32) -> (i32, i32) {
    %c0_i32 = arith.constant 0 : i32
    %c0_i32_0 = arith.constant 0 : i32
    %c0_i32_1 = arith.constant 0 : i32
    return %c0_i32, %c0_i32_0 : i32, i32
  }
  func.func @transform_3(%arg0: i32) -> (i32, i32) {
    %c0_i32 = arith.constant 0 : i32
    %c0_i32_0 = arith.constant 0 : i32
    %c0_i32_1 = arith.constant 0 : i32
    return %c0_i32, %c0_i32_0 : i32, i32
  }
  func.func @transform_4(%arg0: i32) -> (i32, i32) {
    %c0_i32 = arith.constant 0 : i32
    %c0_i32_0 = arith.constant 0 : i32
    %c0_i32_1 = arith.constant 0 : i32
    return %c0_i32, %c0_i32_0 : i32, i32
  }
  func.func @transform_5(%arg0: i32) -> (i32, i32) {
    %c0_i32 = arith.constant 0 : i32
    %c0_i32_0 = arith.constant 0 : i32
    %c0_i32_1 = arith.constant 0 : i32
    return %c0_i32, %c0_i32_0 : i32, i32
  }
  func.func @transform_6(%arg0: i32) -> (i32, i32) {
    %c0_i32 = arith.constant 0 : i32
    %c0_i32_0 = arith.constant 0 : i32
    %c0_i32_1 = arith.constant 0 : i32
    return %c0_i32, %c0_i32_0 : i32, i32
  }
  func.func @transform_7(%arg0: i32) -> (i32, i32) {
    %c0_i32 = arith.constant 0 : i32
    %c0_i32_0 = arith.constant 0 : i32
    %c0_i32_1 = arith.constant 0 : i32
    return %c0_i32, %c0_i32_0 : i32, i32
  }
  func.func @transform_8(%arg0: i32) -> (i32, i32) {
    %c0_i32 = arith.constant 0 : i32
    %c0_i32_0 = arith.constant 0 : i32
    %c0_i32_1 = arith.constant 0 : i32
    return %c0_i32, %c0_i32_0 : i32, i32
  }
  func.func @transform_9(%arg0: i32) -> (i32, i32) {
    %c0_i32 = arith.constant 0 : i32
    %c0_i32_0 = arith.constant 0 : i32
    %c0_i32_1 = arith.constant 0 : i32
    return %c0_i32, %c0_i32_0 : i32, i32
  }
  func.func @transform_10(%arg0: i32) -> (i32, i32) {
    %c0_i32 = arith.constant 0 : i32
    %c0_i32_0 = arith.constant 0 : i32
    %c0_i32_1 = arith.constant 0 : i32
    return %c0_i32, %c0_i32_0 : i32, i32
  }
  func.func @transform_11(%arg0: i32) -> (i32, i32) {
    %c0_i32 = arith.constant 0 : i32
    %c0_i32_0 = arith.constant 0 : i32
    %c0_i32_1 = arith.constant 0 : i32
    return %c0_i32, %c0_i32_0 : i32, i32
  }
  func.func @transform_12(%arg0: i32) -> (i32, i32) {
    %c0_i32 = arith.constant 0 : i32
    %c0_i32_0 = arith.constant 0 : i32
    %c0_i32_1 = arith.constant 0 : i32
    return %c0_i32, %c0_i32_0 : i32, i32
  }
  func.func @transform_13(%arg0: i32) -> (i32, i32) {
    %c0_i32 = arith.constant 0 : i32
    %c0_i32_0 = arith.constant 0 : i32
    %c0_i32_1 = arith.constant 0 : i32
    return %c0_i32, %c0_i32_0 : i32, i32
  }
  func.func @transform_14(%arg0: i32) -> (i32, i32) {
    %c0_i32 = arith.constant 0 : i32
    %c0_i32_0 = arith.constant 0 : i32
    %c0_i32_1 = arith.constant 0 : i32
    return %c0_i32, %c0_i32_0 : i32, i32
  }
  func.func @transform_15(%arg0: i32) -> (i32, i32) {
    %c0_i32 = arith.constant 0 : i32
    %c0_i32_0 = arith.constant 0 : i32
    %c0_i32_1 = arith.constant 0 : i32
    return %c0_i32, %c0_i32_0 : i32, i32
  }
  func.func @transform_16(%arg0: i32) -> (i32, i32) {
    %c0_i32 = arith.constant 0 : i32
    %c0_i32_0 = arith.constant 0 : i32
    %c0_i32_1 = arith.constant 0 : i32
    return %c0_i32, %c0_i32_0 : i32, i32
  }
  func.func @transform_17(%arg0: i32) -> (i32, i32) {
    %c0_i32 = arith.constant 0 : i32
    %c0_i32_0 = arith.constant 0 : i32
    return %arg0, %c0_i32 : i32, i32
  }
}

</mosaic_0001>

<llo_original>
// kernel: tpu_custom_call.1
$region0: #{tpu_custom_call.1}
  #allocation0 [shape = 'u32[]', space=smem, size = 0x4, offset = 0x4, fixed_abs, tag = 'smem constant byte address 0x4 - core index']
  #allocation1 [shape = 'u32[144,128]{1,0:T(1,128)}', space=vmem, size = 0x12000, scoped, tag = 'internal scratch']
  %s0 = inlined_call_operand.vmem [shape: f32[8,64], index: 0, kind: input, shape index: {}]
  %s1 = inlined_call_operand.vmem [shape: bf16[64,32], index: 1, kind: input, shape index: {}]
  %s2 = inlined_call_operand.vmem [shape: f32[1,32], index: 2, kind: input, shape index: {}]
  %s3 = inlined_call_operand.vmem [shape: bf16[32,32], index: 3, kind: input, shape index: {}]
  %s4 = inlined_call_operand.vmem [shape: f32[1,32], index: 4, kind: input, shape index: {}]
  %s5 = inlined_call_operand.vmem [shape: f32[1,32], index: 5, kind: input, shape index: {}]
  %s6 = inlined_call_operand.vmem [shape: f32[1,32], index: 6, kind: input, shape index: {}]
  %s7 = inlined_call_operand.vmem [shape: bf16[32,128], index: 7, kind: input, shape index: {}]
  %s8 = inlined_call_operand.vmem [shape: f32[1,128], index: 8, kind: input, shape index: {}]
  %s9 = inlined_call_operand.vmem [shape: bf16[128,32], index: 9, kind: input, shape index: {}]
  %s10 = inlined_call_operand.vmem [shape: f32[1,32], index: 10, kind: input, shape index: {}]
  %s11 = inlined_call_operand.vmem [shape: f32[1,32], index: 11, kind: input, shape index: {}]
  %s12 = inlined_call_operand.vmem [shape: f32[1,32], index: 12, kind: input, shape index: {}]
  %s13 = inlined_call_operand.vmem [shape: bf16[32,16], index: 13, kind: input, shape index: {}]
  %s14 = inlined_call_operand.vmem [shape: f32[1,16], index: 14, kind: input, shape index: {}]
  %s15 = inlined_call_operand.vmem [shape: bf16[16,128], index: 15, kind: input, shape index: {}]
  %s16 = inlined_call_operand.vmem [shape: f32[1,128], index: 16, kind: input, shape index: {}]
  %s17 = inlined_call_operand.hbm [shape: f32[8,128], index: 17, kind: output, shape index: {}]
  %s18 = sld [smem:[#allocation0]]
  $region78: #{tpu_custom_call.1} parent=0
    _
  %s20 = ssub.s32 1, %s18
  %s21 = scalar_select 0, %s20, %s18
  $region1: #{tpu_custom_call.1} parent=0
    #allocation2 [shape = 'u8[4096]{0}', space=vmem, size = 0x1000, scoped, tag = 'output window, operand 0, single buffered']
    #allocation3 [shape = 's32[1]{0}', space=sflag, size = 0x4, scoped, tag = 'scoped memory for tpu_custom_call.1']
    %22 = vsyncpa [#allocation3], 0
    // Predicated region
    $region2: #{tpu_custom_call.1} parent=1 // pred_check
      _
    $region3: #{tpu_custom_call.1} parent=1 // pred_check_branch
      %24 = sbr.rel (0) target = $region5
    $region4: #{tpu_custom_call.1} parent=1 // pred_region
      _
    $region5: #{tpu_custom_call.1} parent=1 // pred_fallthru
      _
    // Predicated region
    $region6: #{tpu_custom_call.1} parent=1 // pred_check
      _
    $region7: #{tpu_custom_call.1} parent=1 // pred_check_branch
      %26 = sbr.rel (0) target = $region9
    $region8: #{tpu_custom_call.1} parent=1 // pred_region
      _
    $region9: #{tpu_custom_call.1} parent=1 // pred_fallthru
      _
    // Predicated region
    $region10: #{tpu_custom_call.1} parent=1 // pred_check
      _
    $region11: #{tpu_custom_call.1} parent=1 // pred_check_branch
      %28 = sbr.rel (0) target = $region13
    $region12: #{tpu_custom_call.1} parent=1 // pred_region
      _
    $region13: #{tpu_custom_call.1} parent=1 // pred_fallthru
      _
    // Predicated region
    $region14: #{tpu_custom_call.1} parent=1 // pred_check
      _
    $region15: #{tpu_custom_call.1} parent=1 // pred_check_branch
      %30 = sbr.rel (0) target = $region17
    $region16: #{tpu_custom_call.1} parent=1 // pred_region
      _
    $region17: #{tpu_custom_call.1} parent=1 // pred_fallthru
      _
    // Predicated region
    $region18: #{tpu_custom_call.1} parent=1 // pred_check
      _
    $region19: #{tpu_custom_call.1} parent=1 // pred_check_branch
      %32 = sbr.rel (0) target = $region21
    $region20: #{tpu_custom_call.1} parent=1 // pred_region
      _
    $region21: #{tpu_custom_call.1} parent=1 // pred_fallthru
      _
    // Predicated region
    $region22: #{tpu_custom_call.1} parent=1 // pred_check
      _
    $region23: #{tpu_custom_call.1} parent=1 // pred_check_branch
      %34 = sbr.rel (0) target = $region25
    $region24: #{tpu_custom_call.1} parent=1 // pred_region
      _
    $region25: #{tpu_custom_call.1} parent=1 // pred_fallthru
      _
    // Predicated region
    $region26: #{tpu_custom_call.1} parent=1 // pred_check
      _
    $region27: #{tpu_custom_call.1} parent=1 // pred_check_branch
      %36 = sbr.rel (0) target = $region29
    $region28: #{tpu_custom_call.1} parent=1 // pred_region
      _
    $region29: #{tpu_custom_call.1} parent=1 // pred_fallthru
      _
    // Predicated region
    $region30: #{tpu_custom_call.1} parent=1 // pred_check
      _
    $region31: #{tpu_custom_call.1} parent=1 // pred_check_branch
      %38 = sbr.rel (0) target = $region33
    $region32: #{tpu_custom_call.1} parent=1 // pred_region
      _
    $region33: #{tpu_custom_call.1} parent=1 // pred_fallthru
      _
    // Predicated region
    $region34: #{tpu_custom_call.1} parent=1 // pred_check
      _
    $region35: #{tpu_custom_call.1} parent=1 // pred_check_branch
      %40 = sbr.rel (0) target = $region37
    $region36: #{tpu_custom_call.1} parent=1 // pred_region
      _
    $region37: #{tpu_custom_call.1} parent=1 // pred_fallthru
      _
    // Predicated region
    $region38: #{tpu_custom_call.1} parent=1 // pred_check
      _
    $region39: #{tpu_custom_call.1} parent=1 // pred_check_branch
      %42 = sbr.rel (0) target = $region41
    $region40: #{tpu_custom_call.1} parent=1 // pred_region
      _
    $region41: #{tpu_custom_call.1} parent=1 // pred_fallthru
      _
    // Predicated region
    $region42: #{tpu_custom_call.1} parent=1 // pred_check
      _
    $region43: #{tpu_custom_call.1} parent=1 // pred_check_branch
      %44 = sbr.rel (0) target = $region45
    $region44: #{tpu_custom_call.1} parent=1 // pred_region
      _
    $region45: #{tpu_custom_call.1} parent=1 // pred_fallthru
      _
    // Predicated region
    $region46: #{tpu_custom_call.1} parent=1 // pred_check
      _
    $region47: #{tpu_custom_call.1} parent=1 // pred_check_branch
      %46 = sbr.rel (0) target = $region49
    $region48: #{tpu_custom_call.1} parent=1 // pred_region
      _
    $region49: #{tpu_custom_call.1} parent=1 // pred_fallthru
      _
    // Predicated region
    $region50: #{tpu_custom_call.1} parent=1 // pred_check
      _
    $region51: #{tpu_custom_call.1} parent=1 // pred_check_branch
      %48 = sbr.rel (0) target = $region53
    $region52: #{tpu_custom_call.1} parent=1 // pred_region
      _
    $region53: #{tpu_custom_call.1} parent=1 // pred_fallthru
      _
    // Predicated region
    $region54: #{tpu_custom_call.1} parent=1 // pred_check
      _
    $region55: #{tpu_custom_call.1} parent=1 // pred_check_branch
      %50 = sbr.rel (0) target = $region57
    $region56: #{tpu_custom_call.1} parent=1 // pred_region
      _
    $region57: #{tpu_custom_call.1} parent=1 // pred_fallthru
      _
    // Predicated region
    $region58: #{tpu_custom_call.1} parent=1 // pred_check
      _
    $region59: #{tpu_custom_call.1} parent=1 // pred_check_branch
      %52 = sbr.rel (0) target = $region61
    $region60: #{tpu_custom_call.1} parent=1 // pred_region
      _
    $region61: #{tpu_custom_call.1} parent=1 // pred_fallthru
      _
    // Predicated region
    $region62: #{tpu_custom_call.1} parent=1 // pred_check
      _
    $region63: #{tpu_custom_call.1} parent=1 // pred_check_branch
      %54 = sbr.rel (0) target = $region65
    $region64: #{tpu_custom_call.1} parent=1 // pred_region
      _
    $region65: #{tpu_custom_call.1} parent=1 // pred_fallthru
      _
    // Predicated region
    $region66: #{tpu_custom_call.1} parent=1 // pred_check
      _
    $region67: #{tpu_custom_call.1} parent=1 // pred_check_branch
      %56 = sbr.rel (0) target = $region69
    $region68: #{tpu_custom_call.1} parent=1 // pred_region
      _
    $region69: #{tpu_custom_call.1} parent=1 // pred_fallthru
      _
    %v58 = vld [vmem:[%s0] sm:$0xff]
    %v59 = vpack.c.bf16 %v58, %v58
    %v60 = vld [vmem:[%s1] sm:$0xf]
    %v61 = vld [vmem:[%s1 + $0x4] sm:$0xf]
    %v62 = vld [vmem:[%s1 + $0x8] sm:$0xf]
    %v63 = vld [vmem:[%s1 + $0xc] sm:$0xf]
    %v64 = vld [vmem:[%s1 + $0x10] sm:$0xf]
    %v65 = vld [vmem:[%s1 + $0x14] sm:$0xf]
    %v66 = vld [vmem:[%s1 + $0x18] sm:$0xf]
    %v67 = vld [vmem:[%s1 + $0x1c] sm:$0xf]
    %v68 = vld [vmem:[%s2] sm:$0x1]
    %v70 = vlaneseq
    %v71 = vshrl.u32 %v70, 7
    %v72 = vsub.s32 0, %v71
    %v73 = vrot.slane %v68, %v72
    %v83 = vunpack.c.l.b16 %v60
    %v84 = vunpack.c.l.b16 %v61
    %v85 = vunpack.c.l.b16 %v62
    %v86 = vunpack.c.l.b16 %v63
    %v87 = vunpack.c.l.b16 %v64
    %v88 = vunpack.c.l.b16 %v65
    %v89 = vunpack.c.l.b16 %v66
    %v90 = vunpack.c.l.b16 %v67
    %v91 = vpack.c.b16 %v84, %v83
    %v92 = vpack.c.b16 %v86, %v85
    %v93 = vpack.c.b16 %v88, %v87
    %v94 = vpack.c.b16 %v90, %v89
    %vm99 = vcmask 523264
    %v101 = vsel %vm99, %v59, 0
    %103 = vmatprep.subr.bf16.mxu0 0
    %104 = vmatpush1.bf16.msra.mxu0 %v91
    %105 = vmatprep.subr.bf16.mxu0 0
    %106 = vmatpush1.bf16.msra.mxu0 %v92
    %107 = vmatprep.subr.bf16.mxu0 0
    %108 = vmatpush1.bf16.msra.mxu0 %v93
    %109 = vmatprep.subr.bf16.mxu0 0
    %110 = vmatpush1.bf16.msra.mxu0 %v94
    %111 = vmatprep.subr.bf16.mxu0 0
    %112 = vmatpush1.bf16.msra.mxu0 0
    %113 = vmatprep.subr.bf16.mxu0 0
    %114 = vmatpush1.bf16.msra.mxu0 0
    %115 = vmatprep.subr.bf16.mxu0 0
    %116 = vmatpush1.bf16.msra.mxu0 0
    %117 = vmatprep.subr.bf16.mxu0 0
    %118 = vmatpush1.bf16.msra.mxu0 0
    %119 = vmatprep.subr.bf16.mxu0 0
    %120 = vmatpush1.bf16.msra.mxu0 0
    %121 = vmatprep.subr.bf16.mxu0 0
    %122 = vmatpush1.bf16.msra.mxu0 0
    %123 = vmatprep.subr.bf16.mxu0 0
    %124 = vmatpush1.bf16.msra.mxu0 0
    %125 = vmatprep.subr.bf16.mxu0 0
    %126 = vmatpush1.bf16.msra.mxu0 0
    %127 = vmatprep.subr.bf16.mxu0 0
    %128 = vmatpush1.bf16.msra.mxu0 0
    %129 = vmatprep.subr.bf16.mxu0 0
    %130 = vmatpush1.bf16.msra.mxu0 0
    %131 = vmatprep.subr.bf16.mxu0 0
    %132 = vmatpush1.bf16.msra.mxu0 0
    %133 = vmatprep.subr.bf16.mxu0 0
    %134 = vmatpush1.bf16.msra.mxu0 0
    %135 = vmatprep.mubr.bf16.mxu0 0
    %136 = vmatmul.mubr.bf16.gmra.mrb[0].mxu0 %v101
    %v137 = vpop.f32.mrb[0].mxu0
    %v138 = vadd.f32 %v73, %v137
    %v139 = vpop.f32.mrb[0].mxu0
    %v140 = vpop.f32.mrb[0].mxu0
    %v141 = vpop.f32.mrb[0].mxu0
    %142 = vdwg.mxu0
    %v143 = vpack.c.bf16 %v138, %v138
    %v144 = vld [vmem:[%s3] sm:$0xf]
    %v145 = vld [vmem:[%s3 + $0x4] sm:$0xf]
    %v146 = vld [vmem:[%s3 + $0x8] sm:$0xf]
    %v147 = vld [vmem:[%s3 + $0xc] sm:$0xf]
    %v148 = vld [vmem:[%s4] sm:$0x1]
    %v150 = vlaneseq
    %v151 = vshrl.u32 %v150, 7
    %v152 = vsub.s32 0, %v151
    %v153 = vrot.slane %v148, %v152
    %v159 = vunpack.c.l.b16 %v144
    %v160 = vunpack.c.l.b16 %v145
    %v161 = vunpack.c.l.b16 %v146
    %v162 = vunpack.c.l.b16 %v147
    %v163 = vpack.c.b16 %v160, %v159
    %v164 = vpack.c.b16 %v162, %v161
    %vm167 = vcmask 261120
    %v169 = vsel %vm167, %v143, 0
    %171 = vmatprep.subr.bf16.mxu0 0
    %172 = vmatpush1.bf16.msra.mxu0 %v163
    %173 = vmatprep.subr.bf16.mxu0 0
    %174 = vmatpush1.bf16.msra.mxu0 %v164
    %175 = vmatprep.subr.bf16.mxu0 0
    %176 = vmatpush1.bf16.msra.mxu0 0
    %177 = vmatprep.subr.bf16.mxu0 0
    %178 = vmatpush1.bf16.msra.mxu0 0
    %179 = vmatprep.subr.bf16.mxu0 0
    %180 = vmatpush1.bf16.msra.mxu0 0
    %181 = vmatprep.subr.bf16.mxu0 0
    %182 = vmatpush1.bf16.msra.mxu0 0
    %183 = vmatprep.subr.bf16.mxu0 0
    %184 = vmatpush1.bf16.msra.mxu0 0
    %185 = vmatprep.subr.bf16.mxu0 0
    %186 = vmatpush1.bf16.msra.mxu0 0
    %187 = vmatprep.subr.bf16.mxu0 0
    %188 = vmatpush1.bf16.msra.mxu0 0
    %189 = vmatprep.subr.bf16.mxu0 0
    %190 = vmatpush1.bf16.msra.mxu0 0
    %191 = vmatprep.subr.bf16.mxu0 0
    %192 = vmatpush1.bf16.msra.mxu0 0
    %193 = vmatprep.subr.bf16.mxu0 0
    %194 = vmatpush1.bf16.msra.mxu0 0
    %195 = vmatprep.subr.bf16.mxu0 0
    %196 = vmatpush1.bf16.msra.mxu0 0
    %197 = vmatprep.subr.bf16.mxu0 0
    %198 = vmatpush1.bf16.msra.mxu0 0
    %199 = vmatprep.subr.bf16.mxu0 0
    %200 = vmatpush1.bf16.msra.mxu0 0
    %201 = vmatprep.subr.bf16.mxu0 0
    %202 = vmatpush1.bf16.msra.mxu0 0
    %203 = vmatprep.mubr.bf16.mxu0 0
    %204 = vmatmul.mubr.bf16.gmra.mrb[0].mxu0 %v169
    %v205 = vpop.f32.mrb[0].mxu0
    %v206 = vadd.f32 %v153, %v205
    %v207 = vpop.f32.mrb[0].mxu0
    %v208 = vpop.f32.mrb[0].mxu0
    %v209 = vpop.f32.mrb[0].mxu0
    %210 = vdwg.mxu0
    %v211 = vadd.f32 %v138, %v206
    %v212 = vld [vmem:[%s5] sm:$0x1]
    %v213 = vld [vmem:[%s6] sm:$0x1]
    %v214 = vsel %vm167, %v211, 0.0
    %215 = vadd.xlane.f32.xlu0 %v214
    %v216 = vpop.xlane.xlu0 %215
    %v217 = vrcp.pop 32.0
    %v218 = vmul.f32 %v216, %v217
    %v219 = vmul.f32 %v211, %v211
    %v220 = vsel %vm167, %v219, 0.0
    %221 = vadd.xlane.f32.xlu0 %v220
    %v222 = vpop.xlane.xlu0 %221
    %v223 = vmul.f32 %v222, %v217
    %v224 = vmul.f32 %v218, %v218
    %v225 = vsub.f32 %v223, %v224
    %v226 = vsub.f32 %v211, %v218
    %v227 = vadd.f32 %v225, 1e-05
    %v228 = vrsqrt.pop %v227
    %v229 = vmul.f32 %v226, %v228
    %v231 = vlaneseq
    %v232 = vshrl.u32 %v231, 7
    %v233 = vsub.s32 0, %v232
    %v234 = vrot.slane %v212, %v233
    %v236 = vmul.f32 %v229, %v234
    %v238 = vlaneseq
    %v239 = vshrl.u32 %v238, 7
    %v240 = vsub.s32 0, %v239
    %v241 = vrot.slane %v213, %v240
    %v243 = vadd.f32 %v236, %v241
    %v244 = vpack.c.bf16 %v243, %v243
    %v245 = vld [vmem:[%s7] sm:$0xf]
    %v246 = vld [vmem:[%s7 + $0x4] sm:$0xf]
    %v247 = vld [vmem:[%s7 + $0x8] sm:$0xf]
    %v248 = vld [vmem:[%s7 + $0xc] sm:$0xf]
    %v249 = vld [vmem:[%s8] sm:$0x1]
    %v251 = vlaneseq
    %v252 = vshrl.u32 %v251, 7
    %v253 = vsub.s32 0, %v252
    %v254 = vrot.slane %v249, %v253
    %v260 = vunpack.c.l.b16 %v245
    %v261 = vunpack.c.l.b16 %v246
    %v262 = vunpack.c.l.b16 %v247
    %v263 = vunpack.c.l.b16 %v248
    %v264 = vpack.c.b16 %v261, %v260
    %v265 = vpack.c.b16 %v263, %v262
    %v269 = vsel %vm167, %v244, 0
    %271 = vmatprep.subr.bf16.mxu0 0
    %272 = vmatpush1.bf16.msra.mxu0 %v264
    %273 = vmatprep.subr.bf16.mxu0 0
    %274 = vmatpush1.bf16.msra.mxu0 %v265
    %275 = vmatprep.subr.bf16.mxu0 0
    %276 = vmatpush1.bf16.msra.mxu0 0
    %277 = vmatprep.subr.bf16.mxu0 0
    %278 = vmatpush1.bf16.msra.mxu0 0
    %279 = vmatprep.subr.bf16.mxu0 0
    %280 = vmatpush1.bf16.msra.mxu0 0
    %281 = vmatprep.subr.bf16.mxu0 0
    %282 = vmatpush1.bf16.msra.mxu0 0
    %283 = vmatprep.subr.bf16.mxu0 0
    %284 = vmatpush1.bf16.msra.mxu0 0
    %285 = vmatprep.subr.bf16.mxu0 0
    %286 = vmatpush1.bf16.msra.mxu0 0
    %287 = vmatprep.subr.bf16.mxu0 0
    %288 = vmatpush1.bf16.msra.mxu0 0
    %289 = vmatprep.subr.bf16.mxu0 0
    %290 = vmatpush1.bf16.msra.mxu0 0
    %291 = vmatprep.subr.bf16.mxu0 0
    %292 = vmatpush1.bf16.msra.mxu0 0
    %293 = vmatprep.subr.bf16.mxu0 0
    %294 = vmatpush1.bf16.msra.mxu0 0
    %295 = vmatprep.subr.bf16.mxu0 0
    %296 = vmatpush1.bf16.msra.mxu0 0
    %297 = vmatprep.subr.bf16.mxu0 0
    %298 = vmatpush1.bf16.msra.mxu0 0
    %299 = vmatprep.subr.bf16.mxu0 0
    %300 = vmatpush1.bf16.msra.mxu0 0
    %301 = vmatprep.subr.bf16.mxu0 0
    %302 = vmatpush1.bf16.msra.mxu0 0
    %303 = vmatprep.mubr.bf16.mxu0 0
    %304 = vmatmul.mubr.bf16.gmra.mrb[0].mxu0 %v269
    %v305 = vpop.f32.mrb[0].mxu0
    %v306 = vadd.f32 %v254, %v305
    %v307 = vpop.f32.mrb[0].mxu0
    %v308 = vpop.f32.mrb[0].mxu0
    %v309 = vpop.f32.mrb[0].mxu0
    %310 = vdwg.mxu0
    %v311 = vmax.f32 %v306, 0.0
    %v312 = vpack.c.bf16 %v311, %v311
    %v313 = vld [vmem:[%s9] sm:$0xf]
    %v314 = vld [vmem:[%s9 + $0x4] sm:$0xf]
    %v315 = vld [vmem:[%s9 + $0x8] sm:$0xf]
    %v316 = vld [vmem:[%s9 + $0xc] sm:$0xf]
    %v317 = vld [vmem:[%s9 + $0x10] sm:$0xf]
    %v318 = vld [vmem:[%s9 + $0x14] sm:$0xf]
    %v319 = vld [vmem:[%s9 + $0x18] sm:$0xf]
    %v320 = vld [vmem:[%s9 + $0x1c] sm:$0xf]
    %v321 = vld [vmem:[%s9 + $0x20] sm:$0xf]
    %v322 = vld [vmem:[%s9 + $0x24] sm:$0xf]
    %v323 = vld [vmem:[%s9 + $0x28] sm:$0xf]
    %v324 = vld [vmem:[%s9 + $0x2c] sm:$0xf]
    %v325 = vld [vmem:[%s9 + $0x30] sm:$0xf]
    %v326 = vld [vmem:[%s9 + $0x34] sm:$0xf]
    %v327 = vld [vmem:[%s9 + $0x38] sm:$0xf]
    %v328 = vld [vmem:[%s9 + $0x3c] sm:$0xf]
    %v329 = vld [vmem:[%s10] sm:$0x1]
    %v331 = vlaneseq
    %v332 = vshrl.u32 %v331, 7
    %v333 = vsub.s32 0, %v332
    %v334 = vrot.slane %v329, %v333
    %v352 = vunpack.c.l.b16 %v313
    %v353 = vunpack.c.l.b16 %v314
    %v354 = vunpack.c.l.b16 %v315
    %v355 = vunpack.c.l.b16 %v316
    %v356 = vunpack.c.l.b16 %v317
    %v357 = vunpack.c.l.b16 %v318
    %v358 = vunpack.c.l.b16 %v319
    %v359 = vunpack.c.l.b16 %v320
    %v360 = vunpack.c.l.b16 %v321
    %v361 = vunpack.c.l.b16 %v322
    %v362 = vunpack.c.l.b16 %v323
    %v363 = vunpack.c.l.b16 %v324
    %v364 = vunpack.c.l.b16 %v325
    %v365 = vunpack.c.l.b16 %v326
    %v366 = vunpack.c.l.b16 %v327
    %v367 = vunpack.c.l.b16 %v328
    %v368 = vpack.c.b16 %v353, %v352
    %v369 = vpack.c.b16 %v355, %v354
    %v370 = vpack.c.b16 %v357, %v356
    %v371 = vpack.c.b16 %v359, %v358
    %v372 = vpack.c.b16 %v361, %v360
    %v373 = vpack.c.b16 %v363, %v362
    %v374 = vpack.c.b16 %v365, %v364
    %v375 = vpack.c.b16 %v367, %v366
    %384 = vmatprep.subr.bf16.mxu0 0
    %385 = vmatpush1.bf16.msra.mxu0 %v368
    %386 = vmatprep.subr.bf16.mxu0 0
    %387 = vmatpush1.bf16.msra.mxu0 %v369
    %388 = vmatprep.subr.bf16.mxu0 0
    %389 = vmatpush1.bf16.msra.mxu0 %v370
    %390 = vmatprep.subr.bf16.mxu0 0
    %391 = vmatpush1.bf16.msra.mxu0 %v371
    %392 = vmatprep.subr.bf16.mxu0 0
    %393 = vmatpush1.bf16.msra.mxu0 %v372
    %394 = vmatprep.subr.bf16.mxu0 0
    %395 = vmatpush1.bf16.msra.mxu0 %v373
    %396 = vmatprep.subr.bf16.mxu0 0
    %397 = vmatpush1.bf16.msra.mxu0 %v374
    %398 = vmatprep.subr.bf16.mxu0 0
    %399 = vmatpush1.bf16.msra.mxu0 %v375
    %400 = vmatprep.subr.bf16.mxu0 0
    %401 = vmatpush1.bf16.msra.mxu0 0
    %402 = vmatprep.subr.bf16.mxu0 0
    %403 = vmatpush1.bf16.msra.mxu0 0
    %404 = vmatprep.subr.bf16.mxu0 0
    %405 = vmatpush1.bf16.msra.mxu0 0
    %406 = vmatprep.subr.bf16.mxu0 0
    %407 = vmatpush1.bf16.msra.mxu0 0
    %408 = vmatprep.subr.bf16.mxu0 0
    %409 = vmatpush1.bf16.msra.mxu0 0
    %410 = vmatprep.subr.bf16.mxu0 0
    %411 = vmatpush1.bf16.msra.mxu0 0
    %412 = vmatprep.subr.bf16.mxu0 0
    %413 = vmatpush1.bf16.msra.mxu0 0
    %414 = vmatprep.subr.bf16.mxu0 0
    %415 = vmatpush1.bf16.msra.mxu0 0
    %416 = vmatprep.mubr.bf16.mxu0 0
    %417 = vmatmul.mubr.bf16.gmra.mrb[0].mxu0 %v312
    %v418 = vpop.f32.mrb[0].mxu0
    %v419 = vadd.f32 %v334, %v418
    %v420 = vpop.f32.mrb[0].mxu0
    %v421 = vpop.f32.mrb[0].mxu0
    %v422 = vpop.f32.mrb[0].mxu0
    %423 = vdwg.mxu0
    %v424 = vadd.f32 %v243, %v419
    %v425 = vld [vmem:[%s11] sm:$0x1]
    %v426 = vld [vmem:[%s12] sm:$0x1]
    %v427 = vsel %vm167, %v424, 0.0
    %428 = vadd.xlane.f32.xlu0 %v427
    %v429 = vpop.xlane.xlu0 %428
    %v430 = vmul.f32 %v429, %v217
    %v431 = vmul.f32 %v424, %v424
    %v432 = vsel %vm167, %v431, 0.0
    %433 = vadd.xlane.f32.xlu0 %v432
    %v434 = vpop.xlane.xlu0 %433
    %v435 = vmul.f32 %v434, %v217
    %v436 = vmul.f32 %v430, %v430
    %v437 = vsub.f32 %v435, %v436
    %v438 = vsub.f32 %v424, %v430
    %v439 = vadd.f32 %v437, 1e-05
    %v440 = vrsqrt.pop %v439
    %v441 = vmul.f32 %v438, %v440
    %v443 = vlaneseq
    %v444 = vshrl.u32 %v443, 7
    %v445 = vsub.s32 0, %v444
    %v446 = vrot.slane %v425, %v445
    %v448 = vmul.f32 %v441, %v446
    %v450 = vlaneseq
    %v451 = vshrl.u32 %v450, 7
    %v452 = vsub.s32 0, %v451
    %v453 = vrot.slane %v426, %v452
    %v455 = vadd.f32 %v448, %v453
    %v456 = vpack.c.bf16 %v455, %v455
    %v457 = vld [vmem:[%s13] sm:$0xf]
    %v458 = vld [vmem:[%s13 + $0x4] sm:$0xf]
    %v459 = vld [vmem:[%s13 + $0x8] sm:$0xf]
    %v460 = vld [vmem:[%s13 + $0xc] sm:$0xf]
    %v461 = vld [vmem:[%s14] sm:$0x1]
    %v463 = vlaneseq
    %v464 = vshrl.u32 %v463, 7
    %v465 = vsub.s32 0, %v464
    %v466 = vrot.slane %v461, %v465
    %v472 = vunpack.c.l.b16 %v457
    %v473 = vunpack.c.l.b16 %v458
    %v474 = vunpack.c.l.b16 %v459
    %v475 = vunpack.c.l.b16 %v460
    %v476 = vpack.c.b16 %v473, %v472
    %v477 = vpack.c.b16 %v475, %v474
    %v481 = vsel %vm167, %v456, 0
    %483 = vmatprep.subr.bf16.mxu0 0
    %484 = vmatpush1.bf16.msra.mxu0 %v476
    %485 = vmatprep.subr.bf16.mxu0 0
    %486 = vmatpush1.bf16.msra.mxu0 %v477
    %487 = vmatprep.subr.bf16.mxu0 0
    %488 = vmatpush1.bf16.msra.mxu0 0
    %489 = vmatprep.subr.bf16.mxu0 0
    %490 = vmatpush1.bf16.msra.mxu0 0
    %491 = vmatprep.subr.bf16.mxu0 0
    %492 = vmatpush1.bf16.msra.mxu0 0
    %493 = vmatprep.subr.bf16.mxu0 0
    %494 = vmatpush1.bf16.msra.mxu0 0
    %495 = vmatprep.subr.bf16.mxu0 0
    %496 = vmatpush1.bf16.msra.mxu0 0
    %497 = vmatprep.subr.bf16.mxu0 0
    %498 = vmatpush1.bf16.msra.mxu0 0
    %499 = vmatprep.subr.bf16.mxu0 0
    %500 = vmatpush1.bf16.msra.mxu0 0
    %501 = vmatprep.subr.bf16.mxu0 0
    %502 = vmatpush1.bf16.msra.mxu0 0
    %503 = vmatprep.subr.bf16.mxu0 0
    %504 = vmatpush1.bf16.msra.mxu0 0
    %505 = vmatprep.subr.bf16.mxu0 0
    %506 = vmatpush1.bf16.msra.mxu0 0
    %507 = vmatprep.subr.bf16.mxu0 0
    %508 = vmatpush1.bf16.msra.mxu0 0
    %509 = vmatprep.subr.bf16.mxu0 0
    %510 = vmatpush1.bf16.msra.mxu0 0
    %511 = vmatprep.subr.bf16.mxu0 0
    %512 = vmatpush1.bf16.msra.mxu0 0
    %513 = vmatprep.subr.bf16.mxu0 0
    %514 = vmatpush1.bf16.msra.mxu0 0
    %515 = vmatprep.mubr.bf16.mxu0 0
    %516 = vmatmul.mubr.bf16.gmra.mrb[0].mxu0 %v481
    %v517 = vpop.f32.mrb[0].mxu0
    %v518 = vadd.f32 %v466, %v517
    %v519 = vpop.f32.mrb[0].mxu0
    %v520 = vpop.f32.mrb[0].mxu0
    %v521 = vpop.f32.mrb[0].mxu0
    %522 = vdwg.mxu0
    %v523 = vmax.f32 %v518, 0.0
    %v524 = vpack.c.bf16 %v523, %v523
    %v525 = vld [vmem:[%s15] sm:$0xf]
    %v526 = vld [vmem:[%s15 + $0x4] sm:$0xf]
    %v527 = vld [vmem:[%s16] sm:$0x1]
    %v529 = vlaneseq
    %v530 = vshrl.u32 %v529, 7
    %v531 = vsub.s32 0, %v530
    %v532 = vrot.slane %v527, %v531
    %v536 = vunpack.c.l.b16 %v525
    %v537 = vunpack.c.l.b16 %v526
    %v538 = vpack.c.b16 %v537, %v536
    %vm540 = vcmask 130048
    %v542 = vsel %vm540, %v524, 0
    %544 = vmatprep.subr.bf16.mxu0 0
    %545 = vmatpush1.bf16.msra.mxu0 %v538
    %546 = vmatprep.subr.bf16.mxu0 0
    %547 = vmatpush1.bf16.msra.mxu0 0
    %548 = vmatprep.subr.bf16.mxu0 0
    %549 = vmatpush1.bf16.msra.mxu0 0
    %550 = vmatprep.subr.bf16.mxu0 0
    %551 = vmatpush1.bf16.msra.mxu0 0
    %552 = vmatprep.subr.bf16.mxu0 0
    %553 = vmatpush1.bf16.msra.mxu0 0
    %554 = vmatprep.subr.bf16.mxu0 0
    %555 = vmatpush1.bf16.msra.mxu0 0
    %556 = vmatprep.subr.bf16.mxu0 0
    %557 = vmatpush1.bf16.msra.mxu0 0
    %558 = vmatprep.subr.bf16.mxu0 0
    %559 = vmatpush1.bf16.msra.mxu0 0
    %560 = vmatprep.subr.bf16.mxu0 0
    %561 = vmatpush1.bf16.msra.mxu0 0
    %562 = vmatprep.subr.bf16.mxu0 0
    %563 = vmatpush1.bf16.msra.mxu0 0
    %564 = vmatprep.subr.bf16.mxu0 0
    %565 = vmatpush1.bf16.msra.mxu0 0
    %566 = vmatprep.subr.bf16.mxu0 0
    %567 = vmatpush1.bf16.msra.mxu0 0
    %568 = vmatprep.subr.bf16.mxu0 0
    %569 = vmatpush1.bf16.msra.mxu0 0
    %570 = vmatprep.subr.bf16.mxu0 0
    %571 = vmatpush1.bf16.msra.mxu0 0
    %572 = vmatprep.subr.bf16.mxu0 0
    %573 = vmatpush1.bf16.msra.mxu0 0
    %574 = vmatprep.subr.bf16.mxu0 0
    %575 = vmatpush1.bf16.msra.mxu0 0
    %576 = vmatprep.mubr.bf16.mxu0 0
    %577 = vmatmul.mubr.bf16.gmra.mrb[0].mxu0 %v542
    %v578 = vpop.f32.mrb[0].mxu0
    %v579 = vadd.f32 %v532, %v578
    %v580 = vpop.f32.mrb[0].mxu0
    %v581 = vpop.f32.mrb[0].mxu0
    %v582 = vpop.f32.mrb[0].mxu0
    %583 = vdwg.mxu0
    %584 = vmax.xlane.f32.xlu0 %v579
    %v585 = vpop.xlane.xlu0 %584
    %v586 = vsub.f32 %v579, %v585
    %v587 = vmul.f32 %v586, 1.442695
    %v588 = vpow.pop %v587
    %589 = vadd.xlane.f32.xlu0 %v588
    %v590 = vpop.xlane.xlu0 %589
    %v591 = vrcp.pop %v590
    %v592 = vmul.f32 %v588, %v591
    %593 = vst [vmem:[#allocation2] sm:$0xff] %v592
    // Predicated region
    $region70: #{tpu_custom_call.1} parent=1 // pred_check
      _
    $region71: #{tpu_custom_call.1} parent=1 // pred_check_branch
      %595 = sbr.rel (0) target = $region73
    $region72: #{tpu_custom_call.1} parent=1 // pred_region
      %s597 = ssub.s32 128, 128
      %598 = vsyncadd [#allocation3], %s597
      %s600 = sshll.u32 [#allocation2], 4
      %s601 = int_to_ptr.vmem [resolvable:$true] %s600
      %603 = dma.vmem_to_hbm [thread:$0]  %s601, 128, %s17, [#allocation3]
    $region73: #{tpu_custom_call.1} parent=1 // pred_fallthru
      _
    // Predicated region
    $region74: #{tpu_custom_call.1} parent=1 // pred_check
      _
    $region75: #{tpu_custom_call.1} parent=1 // pred_check_branch
      %605 = sbr.rel (0) target = $region77
    $region76: #{tpu_custom_call.1} parent=1 // pred_region
      %606 = dma.done [#allocation3], 128
    $region77: #{tpu_custom_call.1} parent=1 // pred_fallthru
      _
    %607 = vsyncpa [#allocation3], 1

// kernel: tpu_custom_call.1
$region0: #{tpu_custom_call.1}
  #allocation0 [shape = 'u32[]', space=smem, size = 0x4, offset = 0x4, fixed_abs, tag = 'smem constant byte address 0x4 - core index']
  #allocation1 [shape = 'u32[144,128]{1,0:T(1,128)}', space=vmem, size = 0x12000, scoped, tag = 'internal scratch']
  %s0 = inlined_call_operand.vmem [shape: f32[8,64], index: 0, kind: input, shape index: {}]
  %s1 = inlined_call_operand.vmem [shape: bf16[64,32], index: 1, kind: input, shape index: {}]
  %s2 = inlined_call_operand.vmem [shape: f32[1,32], index: 2, kind: input, shape index: {}]
  %s3 = inlined_call_operand.vmem [shape: bf16[32,32], index: 3, kind: input, shape index: {}]
  %s4 = inlined_call_operand.vmem [shape: f32[1,32], index: 4, kind: input, shape index: {}]
  %s5 = inlined_call_operand.vmem [shape: f32[1,32], index: 5, kind: input, shape index: {}]
  %s6 = inlined_call_operand.vmem [shape: f32[1,32], index: 6, kind: input, shape index: {}]
  %s7 = inlined_call_operand.vmem [shape: bf16[32,128], index: 7, kind: input, shape index: {}]
  %s8 = inlined_call_operand.vmem [shape: f32[1,128], index: 8, kind: input, shape index: {}]
  %s9 = inlined_call_operand.vmem [shape: bf16[128,32], index: 9, kind: input, shape index: {}]
  %s10 = inlined_call_operand.vmem [shape: f32[1,32], index: 10, kind: input, shape index: {}]
  %s11 = inlined_call_operand.vmem [shape: f32[1,32], index: 11, kind: input, shape index: {}]
  %s12 = inlined_call_operand.vmem [shape: f32[1,32], index: 12, kind: input, shape index: {}]
  %s13 = inlined_call_operand.vmem [shape: bf16[32,16], index: 13, kind: input, shape index: {}]
  %s14 = inlined_call_operand.vmem [shape: f32[1,16], index: 14, kind: input, shape index: {}]
  %s15 = inlined_call_operand.vmem [shape: bf16[16,128], index: 15, kind: input, shape index: {}]
  %s16 = inlined_call_operand.vmem [shape: f32[1,128], index: 16, kind: input, shape index: {}]
  %s17 = inlined_call_operand.hbm [shape: f32[8,128], index: 17, kind: output, shape index: {}]
  %s18 = sld [smem:[#allocation0]]
  $region78: #{tpu_custom_call.1} parent=0
    _
  %s20 = ssub.s32 1, %s18
  %s21 = scalar_select 0, %s20, %s18
  $region1: #{tpu_custom_call.1} parent=0
    #allocation2 [shape = 'u8[4096]{0}', space=vmem, size = 0x1000, scoped, tag = 'output window, operand 0, single buffered']
    #allocation3 [shape = 's32[1]{0}', space=sflag, size = 0x4, scoped, tag = 'scoped memory for tpu_custom_call.1']
    %22 = vsyncpa [#allocation3], 0
    // Predicated region
    $region2: #{tpu_custom_call.1} parent=1 // pred_check
      _
    $region3: #{tpu_custom_call.1} parent=1 // pred_check_branch
      %24 = sbr.rel (0) target = $region5
    $region4: #{tpu_custom_call.1} parent=1 // pred_region
      _
    $region5: #{tpu_custom_call.1} parent=1 // pred_fallthru
      _
    // Predicated region
    $region6: #{tpu_custom_call.1} parent=1 // pred_check
      _
    $region7: #{tpu_custom_call.1} parent=1 // pred_check_branch
      %26 = sbr.rel (0) target = $region9
    $region8: #{tpu_custom_call.1} parent=1 // pred_region
      _
    $region9: #{tpu_custom_call.1} parent=1 // pred_fallthru
      _
    // Predicated region
    $region10: #{tpu_custom_call.1} parent=1 // pred_check
      _
    $region11: #{tpu_custom_call.1} parent=1 // pred_check_branch
      %28 = sbr.rel (0) target = $region13
    $region12: #{tpu_custom_call.1} parent=1 // pred_region
      _
    $region13: #{tpu_custom_call.1} parent=1 // pred_fallthru
      _
    // Predicated region
    $region14: #{tpu_custom_call.1} parent=1 // pred_check
      _
    $region15: #{tpu_custom_call.1} parent=1 // pred_check_branch
      %30 = sbr.rel (0) target = $region17
    $region16: #{tpu_custom_call.1} parent=1 // pred_region
      _
    $region17: #{tpu_custom_call.1} parent=1 // pred_fallthru
      _
    // Predicated region
    $region18: #{tpu_custom_call.1} parent=1 // pred_check
      _
    $region19: #{tpu_custom_call.1} parent=1 // pred_check_branch
      %32 = sbr.rel (0) target = $region21
    $region20: #{tpu_custom_call.1} parent=1 // pred_region
      _
    $region21: #{tpu_custom_call.1} parent=1 // pred_fallthru
      _
    // Predicated region
    $region22: #{tpu_custom_call.1} parent=1 // pred_check
      _
    $region23: #{tpu_custom_call.1} parent=1 // pred_check_branch
      %34 = sbr.rel (0) target = $region25
    $region24: #{tpu_custom_call.1} parent=1 // pred_region
      _
    $region25: #{tpu_custom_call.1} parent=1 // pred_fallthru
      _
    // Predicated region
    $region26: #{tpu_custom_call.1} parent=1 // pred_check
      _
    $region27: #{tpu_custom_call.1} parent=1 // pred_check_branch
      %36 = sbr.rel (0) target = $region29
    $region28: #{tpu_custom_call.1} parent=1 // pred_region
      _
    $region29: #{tpu_custom_call.1} parent=1 // pred_fallthru
      _
    // Predicated region
    $region30: #{tpu_custom_call.1} parent=1 // pred_check
      _
    $region31: #{tpu_custom_call.1} parent=1 // pred_check_branch
      %38 = sbr.rel (0) target = $region33
    $region32: #{tpu_custom_call.1} parent=1 // pred_region
      _
    $region33: #{tpu_custom_call.1} parent=1 // pred_fallthru
      _
    // Predicated region
    $region34: #{tpu_custom_call.1} parent=1 // pred_check
      _
    $region35: #{tpu_custom_call.1} parent=1 // pred_check_branch
      %40 = sbr.rel (0) target = $region37
    $region36: #{tpu_custom_call.1} parent=1 // pred_region
      _
    $region37: #{tpu_custom_call.1} parent=1 // pred_fallthru
      _
    // Predicated region
    $region38: #{tpu_custom_call.1} parent=1 // pred_check
      _
    $region39: #{tpu_custom_call.1} parent=1 // pred_check_branch
      %42 = sbr.rel (0) target = $region41
    $region40: #{tpu_custom_call.1} parent=1 // pred_region
      _
    $region41: #{tpu_custom_call.1} parent=1 // pred_fallthru
      _
    // Predicated region
    $region42: #{tpu_custom_call.1} parent=1 // pred_check
      _
    $region43: #{tpu_custom_call.1} parent=1 // pred_check_branch
      %44 = sbr.rel (0) target = $region45
    $region44: #{tpu_custom_call.1} parent=1 // pred_region
      _
    $region45: #{tpu_custom_call.1} parent=1 // pred_fallthru
      _
    // Predicated region
    $region46: #{tpu_custom_call.1} parent=1 // pred_check
      _
    $region47: #{tpu_custom_call.1} parent=1 // pred_check_branch
      %46 = sbr.rel (0) target = $region49
    $region48: #{tpu_custom_call.1} parent=1 // pred_region
      _
    $region49: #{tpu_custom_call.1} parent=1 // pred_fallthru
      _
    // Predicated region
    $region50: #{tpu_custom_call.1} parent=1 // pred_check
      _
    $region51: #{tpu_custom_call.1} parent=1 // pred_check_branch
      %48 = sbr.rel (0) target = $region53
    $region52: #{tpu_custom_call.1} parent=1 // pred_region
      _
    $region53: #{tpu_custom_call.1} parent=1 // pred_fallthru
      _
    // Predicated region
    $region54: #{tpu_custom_call.1} parent=1 // pred_check
      _
    $region55: #{tpu_custom_call.1} parent=1 // pred_check_branch
      %50 = sbr.rel (0) target = $region57
    $region56: #{tpu_custom_call.1} parent=1 // pred_region
      _
    $region57: #{tpu_custom_call.1} parent=1 // pred_fallthru
      _
    // Predicated region
    $region58: #{tpu_custom_call.1} parent=1 // pred_check
      _
    $region59: #{tpu_custom_call.1} parent=1 // pred_check_branch
      %52 = sbr.rel (0) target = $region61
    $region60: #{tpu_custom_call.1} parent=1 // pred_region
      _
    $region61: #{tpu_custom_call.1} parent=1 // pred_fallthru
      _
    // Predicated region
    $region62: #{tpu_custom_call.1} parent=1 // pred_check
      _
    $region63: #{tpu_custom_call.1} parent=1 // pred_check_branch
      %54 = sbr.rel (0) target = $region65
    $region64: #{tpu_custom_call.1} parent=1 // pred_region
      _
    $region65: #{tpu_custom_call.1} parent=1 // pred_fallthru
      _
    // Predicated region
    $region66: #{tpu_custom_call.1} parent=1 // pred_check
      _
    $region67: #{tpu_custom_call.1} parent=1 // pred_check_branch
      %56 = sbr.rel (0) target = $region69
    $region68: #{tpu_custom_call.1} parent=1 // pred_region
      _
    $region69: #{tpu_custom_call.1} parent=1 // pred_fallthru
      _
    %v58 = vld [vmem:[%s0] sm:$0xff]
    %v59 = vpack.c.bf16 %v58, %v58
    %v60 = vld [vmem:[%s1] sm:$0xf]
    %v61 = vld [vmem:[%s1 + $0x4] sm:$0xf]
    %v62 = vld [vmem:[%s1 + $0x8] sm:$0xf]
    %v63 = vld [vmem:[%s1 + $0xc] sm:$0xf]
    %v64 = vld [vmem:[%s1 + $0x10] sm:$0xf]
    %v65 = vld [vmem:[%s1 + $0x14] sm:$0xf]
    %v66 = vld [vmem:[%s1 + $0x18] sm:$0xf]
    %v67 = vld [vmem:[%s1 + $0x1c] sm:$0xf]
    %v68 = vld [vmem:[%s2] sm:$0x1]
    %v70 = vlaneseq
    %v71 = vshrl.u32 %v70, 7
    %v72 = vsub.s32 0, %v71
    %v73 = vrot.slane %v68, %v72
    %v83 = vunpack.c.l.b16 %v60
    %v84 = vunpack.c.l.b16 %v61
    %v85 = vunpack.c.l.b16 %v62
    %v86 = vunpack.c.l.b16 %v63
    %v87 = vunpack.c.l.b16 %v64
    %v88 = vunpack.c.l.b16 %v65
    %v89 = vunpack.c.l.b16 %v66
    %v90 = vunpack.c.l.b16 %v67
    %v91 = vpack.c.b16 %v84, %v83
    %v92 = vpack.c.b16 %v86, %v85
    %v93 = vpack.c.b16 %v88, %v87
    %v94 = vpack.c.b16 %v90, %v89
    %vm99 = vcmask 523264
    %v101 = vsel %vm99, %v59, 0
    %103 = vmatprep.subr.bf16.mxu0 0
    %104 = vmatpush1.bf16.msra.mxu0 %v91
    %105 = vmatprep.subr.bf16.mxu0 0
    %106 = vmatpush1.bf16.msra.mxu0 %v92
    %107 = vmatprep.subr.bf16.mxu0 0
    %108 = vmatpush1.bf16.msra.mxu0 %v93
    %109 = vmatprep.subr.bf16.mxu0 0
    %110 = vmatpush1.bf16.msra.mxu0 %v94
    %111 = vmatprep.subr.bf16.mxu0 0
    %112 = vmatpush1.bf16.msra.mxu0 0
    %113 = vmatprep.subr.bf16.mxu0 0
    %114 = vmatpush1.bf16.msra.mxu0 0
    %115 = vmatprep.subr.bf16.mxu0 0
    %116 = vmatpush1.bf16.msra.mxu0 0
    %117 = vmatprep.subr.bf16.mxu0 0
    %118 = vmatpush1.bf16.msra.mxu0 0
    %119 = vmatprep.subr.bf16.mxu0 0
    %120 = vmatpush1.bf16.msra.mxu0 0
    %121 = vmatprep.subr.bf16.mxu0 0
    %122 = vmatpush1.bf16.msra.mxu0 0
    %123 = vmatprep.subr.bf16.mxu0 0
    %124 = vmatpush1.bf16.msra.mxu0 0
    %125 = vmatprep.subr.bf16.mxu0 0
    %126 = vmatpush1.bf16.msra.mxu0 0
    %127 = vmatprep.subr.bf16.mxu0 0
    %128 = vmatpush1.bf16.msra.mxu0 0
    %129 = vmatprep.subr.bf16.mxu0 0
    %130 = vmatpush1.bf16.msra.mxu0 0
    %131 = vmatprep.subr.bf16.mxu0 0
    %132 = vmatpush1.bf16.msra.mxu0 0
    %133 = vmatprep.subr.bf16.mxu0 0
    %134 = vmatpush1.bf16.msra.mxu0 0
    %135 = vmatprep.mubr.bf16.mxu0 0
    %136 = vmatmul.mubr.bf16.gmra.mrb[0].mxu0 %v101
    %v137 = vpop.f32.mrb[0].mxu0
    %v138 = vadd.f32 %v73, %v137
    %v139 = vpop.f32.mrb[0].mxu0
    %v140 = vpop.f32.mrb[0].mxu0
    %v141 = vpop.f32.mrb[0].mxu0
    %142 = vdwg.mxu0
    %v143 = vpack.c.bf16 %v138, %v138
    %v144 = vld [vmem:[%s3] sm:$0xf]
    %v145 = vld [vmem:[%s3 + $0x4] sm:$0xf]
    %v146 = vld [vmem:[%s3 + $0x8] sm:$0xf]
    %v147 = vld [vmem:[%s3 + $0xc] sm:$0xf]
    %v148 = vld [vmem:[%s4] sm:$0x1]
    %v150 = vlaneseq
    %v151 = vshrl.u32 %v150, 7
    %v152 = vsub.s32 0, %v151
    %v153 = vrot.slane %v148, %v152
    %v159 = vunpack.c.l.b16 %v144
    %v160 = vunpack.c.l.b16 %v145
    %v161 = vunpack.c.l.b16 %v146
    %v162 = vunpack.c.l.b16 %v147
    %v163 = vpack.c.b16 %v160, %v159
    %v164 = vpack.c.b16 %v162, %v161
    %vm167 = vcmask 261120
    %v169 = vsel %vm167, %v143, 0
    %171 = vmatprep.subr.bf16.mxu0 0
    %172 = vmatpush1.bf16.msra.mxu0 %v163
    %173 = vmatprep.subr.bf16.mxu0 0
    %174 = vmatpush1.bf16.msra.mxu0 %v164
    %175 = vmatprep.subr.bf16.mxu0 0
    %176 = vmatpush1.bf16.msra.mxu0 0
    %177 = vmatprep.subr.bf16.mxu0 0
    %178 = vmatpush1.bf16.msra.mxu0 0
    %179 = vmatprep.subr.bf16.mxu0 0
    %180 = vmatpush1.bf16.msra.mxu0 0
    %181 = vmatprep.subr.bf16.mxu0 0
    %182 = vmatpush1.bf16.msra.mxu0 0
    %183 = vmatprep.subr.bf16.mxu0 0
    %184 = vmatpush1.bf16.msra.mxu0 0
    %185 = vmatprep.subr.bf16.mxu0 0
    %186 = vmatpush1.bf16.msra.mxu0 0
    %187 = vmatprep.subr.bf16.mxu0 0
    %188 = vmatpush1.bf16.msra.mxu0 0
    %189 = vmatprep.subr.bf16.mxu0 0
    %190 = vmatpush1.bf16.msra.mxu0 0
    %191 = vmatprep.subr.bf16.mxu0 0
    %192 = vmatpush1.bf16.msra.mxu0 0
    %193 = vmatprep.subr.bf16.mxu0 0
    %194 = vmatpush1.bf16.msra.mxu0 0
    %195 = vmatprep.subr.bf16.mxu0 0
    %196 = vmatpush1.bf16.msra.mxu0 0
    %197 = vmatprep.subr.bf16.mxu0 0
    %198 = vmatpush1.bf16.msra.mxu0 0
    %199 = vmatprep.subr.bf16.mxu0 0
    %200 = vmatpush1.bf16.msra.mxu0 0
    %201 = vmatprep.subr.bf16.mxu0 0
    %202 = vmatpush1.bf16.msra.mxu0 0
    %203 = vmatprep.mubr.bf16.mxu0 0
    %204 = vmatmul.mubr.bf16.gmra.mrb[0].mxu0 %v169
    %v205 = vpop.f32.mrb[0].mxu0
    %v206 = vadd.f32 %v153, %v205
    %v207 = vpop.f32.mrb[0].mxu0
    %v208 = vpop.f32.mrb[0].mxu0
    %v209 = vpop.f32.mrb[0].mxu0
    %210 = vdwg.mxu0
    %v211 = vadd.f32 %v138, %v206
    %v212 = vld [vmem:[%s5] sm:$0x1]
    %v213 = vld [vmem:[%s6] sm:$0x1]
    %v214 = vsel %vm167, %v211, 0.0
    %215 = vadd.xlane.f32.xlu0 %v214
    %v216 = vpop.xlane.xlu0 %215
    %v217 = vrcp.pop 32.0
    %v218 = vmul.f32 %v216, %v217
    %v219 = vmul.f32 %v211, %v211
    %v220 = vsel %vm167, %v219, 0.0
    %221 = vadd.xlane.f32.xlu0 %v220
    %v222 = vpop.xlane.xlu0 %221
    %v223 = vmul.f32 %v222, %v217
    %v224 = vmul.f32 %v218, %v218
    %v225 = vsub.f32 %v223, %v224
    %v226 = vsub.f32 %v211, %v218
    %v227 = vadd.f32 %v225, 1e-05
    %v228 = vrsqrt.pop %v227
    %v229 = vmul.f32 %v226, %v228
    %v231 = vlaneseq
    %v232 = vshrl.u32 %v231, 7
    %v233 = vsub.s32 0, %v232
    %v234 = vrot.slane %v212, %v233
    %v236 = vmul.f32 %v229, %v234
    %v238 = vlaneseq
    %v239 = vshrl.u32 %v238, 7
    %v240 = vsub.s32 0, %v239
    %v241 = vrot.slane %v213, %v240
    %v243 = vadd.f32 %v236, %v241
    %v244 = vpack.c.bf16 %v243, %v243
    %v245 = vld [vmem:[%s7] sm:$0xf]
    %v246 = vld [vmem:[%s7 + $0x4] sm:$0xf]
    %v247 = vld [vmem:[%s7 + $0x8] sm:$0xf]
    %v248 = vld [vmem:[%s7 + $0xc] sm:$0xf]
    %v249 = vld [vmem:[%s8] sm:$0x1]
    %v251 = vlaneseq
    %v252 = vshrl.u32 %v251, 7
    %v253 = vsub.s32 0, %v252
    %v254 = vrot.slane %v249, %v253
    %v260 = vunpack.c.l.b16 %v245
    %v261 = vunpack.c.l.b16 %v246
    %v262 = vunpack.c.l.b16 %v247
    %v263 = vunpack.c.l.b16 %v248
    %v264 = vpack.c.b16 %v261, %v260
    %v265 = vpack.c.b16 %v263, %v262
    %v269 = vsel %vm167, %v244, 0
    %271 = vmatprep.subr.bf16.mxu0 0
    %272 = vmatpush1.bf16.msra.mxu0 %v264
    %273 = vmatprep.subr.bf16.mxu0 0
    %274 = vmatpush1.bf16.msra.mxu0 %v265
    %275 = vmatprep.subr.bf16.mxu0 0
    %276 = vmatpush1.bf16.msra.mxu0 0
    %277 = vmatprep.subr.bf16.mxu0 0
    %278 = vmatpush1.bf16.msra.mxu0 0
    %279 = vmatprep.subr.bf16.mxu0 0
    %280 = vmatpush1.bf16.msra.mxu0 0
    %281 = vmatprep.subr.bf16.mxu0 0
    %282 = vmatpush1.bf16.msra.mxu0 0
    %283 = vmatprep.subr.bf16.mxu0 0
    %284 = vmatpush1.bf16.msra.mxu0 0
    %285 = vmatprep.subr.bf16.mxu0 0
    %286 = vmatpush1.bf16.msra.mxu0 0
    %287 = vmatprep.subr.bf16.mxu0 0
    %288 = vmatpush1.bf16.msra.mxu0 0
    %289 = vmatprep.subr.bf16.mxu0 0
    %290 = vmatpush1.bf16.msra.mxu0 0
    %291 = vmatprep.subr.bf16.mxu0 0
    %292 = vmatpush1.bf16.msra.mxu0 0
    %293 = vmatprep.subr.bf16.mxu0 0
    %294 = vmatpush1.bf16.msra.mxu0 0
    %295 = vmatprep.subr.bf16.mxu0 0
    %296 = vmatpush1.bf16.msra.mxu0 0
    %297 = vmatprep.subr.bf16.mxu0 0
    %298 = vmatpush1.bf16.msra.mxu0 0
    %299 = vmatprep.subr.bf16.mxu0 0
    %300 = vmatpush1.bf16.msra.mxu0 0
    %301 = vmatprep.subr.bf16.mxu0 0
    %302 = vmatpush1.bf16.msra.mxu0 0
    %303 = vmatprep.mubr.bf16.mxu0 0
    %304 = vmatmul.mubr.bf16.gmra.mrb[0].mxu0 %v269
    %v305 = vpop.f32.mrb[0].mxu0
    %v306 = vadd.f32 %v254, %v305
    %v307 = vpop.f32.mrb[0].mxu0
    %v308 = vpop.f32.mrb[0].mxu0
    %v309 = vpop.f32.mrb[0].mxu0
    %310 = vdwg.mxu0
    %v311 = vmax.f32 %v306, 0.0
    %v312 = vpack.c.bf16 %v311, %v311
    %v313 = vld [vmem:[%s9] sm:$0xf]
    %v314 = vld [vmem:[%s9 + $0x4] sm:$0xf]
    %v315 = vld [vmem:[%s9 + $0x8] sm:$0xf]
    %v316 = vld [vmem:[%s9 + $0xc] sm:$0xf]
    %v317 = vld [vmem:[%s9 + $0x10] sm:$0xf]
    %v318 = vld [vmem:[%s9 + $0x14] sm:$0xf]
    %v319 = vld [vmem:[%s9 + $0x18] sm:$0xf]
    %v320 = vld [vmem:[%s9 + $0x1c] sm:$0xf]
    %v321 = vld [vmem:[%s9 + $0x20] sm:$0xf]
    %v322 = vld [vmem:[%s9 + $0x24] sm:$0xf]
    %v323 = vld [vmem:[%s9 + $0x28] sm:$0xf]
    %v324 = vld [vmem:[%s9 + $0x2c] sm:$0xf]
    %v325 = vld [vmem:[%s9 + $0x30] sm:$0xf]
    %v326 = vld [vmem:[%s9 + $0x34] sm:$0xf]
    %v327 = vld [vmem:[%s9 + $0x38] sm:$0xf]
    %v328 = vld [vmem:[%s9 + $0x3c] sm:$0xf]
    %v329 = vld [vmem:[%s10] sm:$0x1]
    %v331 = vlaneseq
    %v332 = vshrl.u32 %v331, 7
    %v333 = vsub.s32 0, %v332
    %v334 = vrot.slane %v329, %v333
    %v352 = vunpack.c.l.b16 %v313
    %v353 = vunpack.c.l.b16 %v314
    %v354 = vunpack.c.l.b16 %v315
    %v355 = vunpack.c.l.b16 %v316
    %v356 = vunpack.c.l.b16 %v317
    %v357 = vunpack.c.l.b16 %v318
    %v358 = vunpack.c.l.b16 %v319
    %v359 = vunpack.c.l.b16 %v320
    %v360 = vunpack.c.l.b16 %v321
    %v361 = vunpack.c.l.b16 %v322
    %v362 = vunpack.c.l.b16 %v323
    %v363 = vunpack.c.l.b16 %v324
    %v364 = vunpack.c.l.b16 %v325
    %v365 = vunpack.c.l.b16 %v326
    %v366 = vunpack.c.l.b16 %v327
    %v367 = vunpack.c.l.b16 %v328
    %v368 = vpack.c.b16 %v353, %v352
    %v369 = vpack.c.b16 %v355, %v354
    %v370 = vpack.c.b16 %v357, %v356
    %v371 = vpack.c.b16 %v359, %v358
    %v372 = vpack.c.b16 %v361, %v360
    %v373 = vpack.c.b16 %v363, %v362
    %v374 = vpack.c.b16 %v365, %v364
    %v375 = vpack.c.b16 %v367, %v366
    %384 = vmatprep.subr.bf16.mxu0 0
    %385 = vmatpush1.bf16.msra.mxu0 %v368
    %386 = vmatprep.subr.bf16.mxu0 0
    %387 = vmatpush1.bf16.msra.mxu0 %v369
    %388 = vmatprep.subr.bf16.mxu0 0
    %389 = vmatpush1.bf16.msra.mxu0 %v370
    %390 = vmatprep.subr.bf16.mxu0 0
    %391 = vmatpush1.bf16.msra.mxu0 %v371
    %392 = vmatprep.subr.bf16.mxu0 0
    %393 = vmatpush1.bf16.msra.mxu0 %v372
    %394 = vmatprep.subr.bf16.mxu0 0
    %395 = vmatpush1.bf16.msra.mxu0 %v373
    %396 = vmatprep.subr.bf16.mxu0 0
    %397 = vmatpush1.bf16.msra.mxu0 %v374
    %398 = vmatprep.subr.bf16.mxu0 0
    %399 = vmatpush1.bf16.msra.mxu0 %v375
    %400 = vmatprep.subr.bf16.mxu0 0
    %401 = vmatpush1.bf16.msra.mxu0 0
    %402 = vmatprep.subr.bf16.mxu0 0
    %403 = vmatpush1.bf16.msra.mxu0 0
    %404 = vmatprep.subr.bf16.mxu0 0
    %405 = vmatpush1.bf16.msra.mxu0 0
    %406 = vmatprep.subr.bf16.mxu0 0
    %407 = vmatpush1.bf16.msra.mxu0 0
    %408 = vmatprep.subr.bf16.mxu0 0
    %409 = vmatpush1.bf16.msra.mxu0 0
    %410 = vmatprep.subr.bf16.mxu0 0
    %411 = vmatpush1.bf16.msra.mxu0 0
    %412 = vmatprep.subr.bf16.mxu0 0
    %413 = vmatpush1.bf16.msra.mxu0 0
    %414 = vmatprep.subr.bf16.mxu0 0
    %415 = vmatpush1.bf16.msra.mxu0 0
    %416 = vmatprep.mubr.bf16.mxu0 0
    %417 = vmatmul.mubr.bf16.gmra.mrb[0].mxu0 %v312
    %v418 = vpop.f32.mrb[0].mxu0
    %v419 = vadd.f32 %v334, %v418
    %v420 = vpop.f32.mrb[0].mxu0
    %v421 = vpop.f32.mrb[0].mxu0
    %v422 = vpop.f32.mrb[0].mxu0
    %423 = vdwg.mxu0
    %v424 = vadd.f32 %v243, %v419
    %v425 = vld [vmem:[%s11] sm:$0x1]
    %v426 = vld [vmem:[%s12] sm:$0x1]
    %v427 = vsel %vm167, %v424, 0.0
    %428 = vadd.xlane.f32.xlu0 %v427
    %v429 = vpop.xlane.xlu0 %428
    %v430 = vmul.f32 %v429, %v217
    %v431 = vmul.f32 %v424, %v424
    %v432 = vsel %vm167, %v431, 0.0
    %433 = vadd.xlane.f32.xlu0 %v432
    %v434 = vpop.xlane.xlu0 %433
    %v435 = vmul.f32 %v434, %v217
    %v436 = vmul.f32 %v430, %v430
    %v437 = vsub.f32 %v435, %v436
    %v438 = vsub.f32 %v424, %v430
    %v439 = vadd.f32 %v437, 1e-05
    %v440 = vrsqrt.pop %v439
    %v441 = vmul.f32 %v438, %v440
    %v443 = vlaneseq
    %v444 = vshrl.u32 %v443, 7
    %v445 = vsub.s32 0, %v444
    %v446 = vrot.slane %v425, %v445
    %v448 = vmul.f32 %v441, %v446
    %v450 = vlaneseq
    %v451 = vshrl.u32 %v450, 7
    %v452 = vsub.s32 0, %v451
    %v453 = vrot.slane %v426, %v452
    %v455 = vadd.f32 %v448, %v453
    %v456 = vpack.c.bf16 %v455, %v455
    %v457 = vld [vmem:[%s13] sm:$0xf]
    %v458 = vld [vmem:[%s13 + $0x4] sm:$0xf]
    %v459 = vld [vmem:[%s13 + $0x8] sm:$0xf]
    %v460 = vld [vmem:[%s13 + $0xc] sm:$0xf]
    %v461 = vld [vmem:[%s14] sm:$0x1]
    %v463 = vlaneseq
    %v464 = vshrl.u32 %v463, 7
    %v465 = vsub.s32 0, %v464
    %v466 = vrot.slane %v461, %v465
    %v472 = vunpack.c.l.b16 %v457
    %v473 = vunpack.c.l.b16 %v458
    %v474 = vunpack.c.l.b16 %v459
    %v475 = vunpack.c.l.b16 %v460
    %v476 = vpack.c.b16 %v473, %v472
    %v477 = vpack.c.b16 %v475, %v474
    %v481 = vsel %vm167, %v456, 0
    %483 = vmatprep.subr.bf16.mxu0 0
    %484 = vmatpush1.bf16.msra.mxu0 %v476
    %485 = vmatprep.subr.bf16.mxu0 0
    %486 = vmatpush1.bf16.msra.mxu0 %v477
    %487 = vmatprep.subr.bf16.mxu0 0
    %488 = vmatpush1.bf16.msra.mxu0 0
    %489 = vmatprep.subr.bf16.mxu0 0
    %490 = vmatpush1.bf16.msra.mxu0 0
    %491 = vmatprep.subr.bf16.mxu0 0
    %492 = vmatpush1.bf16.msra.mxu0 0
    %493 = vmatprep.subr.bf16.mxu0 0
    %494 = vmatpush1.bf16.msra.mxu0 0
    %495 = vmatprep.subr.bf16.mxu0 0
    %496 = vmatpush1.bf16.msra.mxu0 0
    %497 = vmatprep.subr.bf16.mxu0 0
    %498 = vmatpush1.bf16.msra.mxu0 0
    %499 = vmatprep.subr.bf16.mxu0 0
    %500 = vmatpush1.bf16.msra.mxu0 0
    %501 = vmatprep.subr.bf16.mxu0 0
    %502 = vmatpush1.bf16.msra.mxu0 0
    %503 = vmatprep.subr.bf16.mxu0 0
    %504 = vmatpush1.bf16.msra.mxu0 0
    %505 = vmatprep.subr.bf16.mxu0 0
    %506 = vmatpush1.bf16.msra.mxu0 0
    %507 = vmatprep.subr.bf16.mxu0 0
    %508 = vmatpush1.bf16.msra.mxu0 0
    %509 = vmatprep.subr.bf16.mxu0 0
    %510 = vmatpush1.bf16.msra.mxu0 0
    %511 = vmatprep.subr.bf16.mxu0 0
    %512 = vmatpush1.bf16.msra.mxu0 0
    %513 = vmatprep.subr.bf16.mxu0 0
    %514 = vmatpush1.bf16.msra.mxu0 0
    %515 = vmatprep.mubr.bf16.mxu0 0
    %516 = vmatmul.mubr.bf16.gmra.mrb[0].mxu0 %v481
    %v517 = vpop.f32.mrb[0].mxu0
    %v518 = vadd.f32 %v466, %v517
    %v519 = vpop.f32.mrb[0].mxu0
    %v520 = vpop.f32.mrb[0].mxu0
    %v521 = vpop.f32.mrb[0].mxu0
    %522 = vdwg.mxu0
    %v523 = vmax.f32 %v518, 0.0
    %v524 = vpack.c.bf16 %v523, %v523
    %v525 = vld [vmem:[%s15] sm:$0xf]
    %v526 = vld [vmem:[%s15 + $0x4] sm:$0xf]
    %v527 = vld [vmem:[%s16] sm:$0x1]
    %v529 = vlaneseq
    %v530 = vshrl.u32 %v529, 7
    %v531 = vsub.s32 0, %v530
    %v532 = vrot.slane %v527, %v531
    %v536 = vunpack.c.l.b16 %v525
    %v537 = vunpack.c.l.b16 %v526
    %v538 = vpack.c.b16 %v537, %v536
    %vm540 = vcmask 130048
    %v542 = vsel %vm540, %v524, 0
    %544 = vmatprep.subr.bf16.mxu0 0
    %545 = vmatpush1.bf16.msra.mxu0 %v538
    %546 = vmatprep.subr.bf16.mxu0 0
    %547 = vmatpush1.bf16.msra.mxu0 0
    %548 = vmatprep.subr.bf16.mxu0 0
    %549 = vmatpush1.bf16.msra.mxu0 0
    %550 = vmatprep.subr.bf16.mxu0 0
    %551 = vmatpush1.bf16.msra.mxu0 0
    %552 = vmatprep.subr.bf16.mxu0 0
    %553 = vmatpush1.bf16.msra.mxu0 0
    %554 = vmatprep.subr.bf16.mxu0 0
    %555 = vmatpush1.bf16.msra.mxu0 0
    %556 = vmatprep.subr.bf16.mxu0 0
    %557 = vmatpush1.bf16.msra.mxu0 0
    %558 = vmatprep.subr.bf16.mxu0 0
    %559 = vmatpush1.bf16.msra.mxu0 0
    %560 = vmatprep.subr.bf16.mxu0 0
    %561 = vmatpush1.bf16.msra.mxu0 0
    %562 = vmatprep.subr.bf16.mxu0 0
    %563 = vmatpush1.bf16.msra.mxu0 0
    %564 = vmatprep.subr.bf16.mxu0 0
    %565 = vmatpush1.bf16.msra.mxu0 0
    %566 = vmatprep.subr.bf16.mxu0 0
    %567 = vmatpush1.bf16.msra.mxu0 0
    %568 = vmatprep.subr.bf16.mxu0 0
    %569 = vmatpush1.bf16.msra.mxu0 0
    %570 = vmatprep.subr.bf16.mxu0 0
    %571 = vmatpush1.bf16.msra.mxu0 0
    %572 = vmatprep.subr.bf16.mxu0 0
    %573 = vmatpush1.bf16.msra.mxu0 0
    %574 = vmatprep.subr.bf16.mxu0 0
    %575 = vmatpush1.bf16.msra.mxu0 0
    %576 = vmatprep.mubr.bf16.mxu0 0
    %577 = vmatmul.mubr.bf16.gmra.mrb[0].mxu0 %v542
    %v578 = vpop.f32.mrb[0].mxu0
    %v579 = vadd.f32 %v532, %v578
    %v580 = vpop.f32.mrb[0].mxu0
    %v581 = vpop.f32.mrb[0].mxu0
    %v582 = vpop.f32.mrb[0].mxu0
    %583 = vdwg.mxu0
    %584 = vmax.xlane.f32.xlu0 %v579
    %v585 = vpop.xlane.xlu0 %584
    %v586 = vsub.f32 %v579, %v585
    %v587 = vmul.f32 %v586, 1.442695
    %v588 = vpow.pop %v587
    %589 = vadd.xlane.f32.xlu0 %v588
    %v590 = vpop.xlane.xlu0 %589
    %v591 = vrcp.pop %v590
    %v592 = vmul.f32 %v588, %v591
    %593 = vst [vmem:[#allocation2] sm:$0xff] %v592
    // Predicated region
    $region70: #{tpu_custom_call.1} parent=1 // pred_check
      _
    $region71: #{tpu_custom_call.1} parent=1 // pred_check_branch
      %595 = sbr.rel (0) target = $region73
    $region72: #{tpu_custom_call.1} parent=1 // pred_region
      %s597 = ssub.s32 128, 128
      %598 = vsyncadd [#allocation3], %s597
      %s600 = sshll.u32 [#allocation2], 4
      %s601 = int_to_ptr.vmem [resolvable:$true] %s600
      %603 = dma.vmem_to_hbm [thread:$0]  %s601, 128, %s17, [#allocation3]
    $region73: #{tpu_custom_call.1} parent=1 // pred_fallthru
      _
    // Predicated region
    $region74: #{tpu_custom_call.1} parent=1 // pred_check
      _
    $region75: #{tpu_custom_call.1} parent=1 // pred_check_branch
      %605 = sbr.rel (0) target = $region77
    $region76: #{tpu_custom_call.1} parent=1 // pred_region
      %606 = dma.done [#allocation3], 128
    $region77: #{tpu_custom_call.1} parent=1 // pred_fallthru
      _
    %607 = vsyncpa [#allocation3], 1

</llo_original>
